<compile_context>
chip_gen: v5e
topology: v5e:2x2
jax: 0.10.0
libtpu: 0.0.40
codegen_flags: <defaults>
</compile_context>

<pallas_src>
import jax
import jax.numpy as jnp
from jax import lax
from jax.experimental import pallas as pl
from jax.experimental.pallas import tpu as pltpu


def lstm_kernel(x_ref, wih_ref, whh_ref, b_ref, gamma_ref, beta_ref,
                wfc_ref, bfc_ref, out_ref, gates_ref):
    """Single-invocation LSTM + LN + ReLU + Linear.

    x_ref:     (T*Bp, D)    time-major slab (batch padded to Bp, a multiple of 8 sublanes)
    wih_ref:   (D, 4H)      W_ih^T, g-gate columns pre-scaled by 2 (PyTorch gate order i,f,g,o)
    whh_ref:   (H, 4H)      W_hh^T, g-gate columns pre-scaled by 2
    b_ref:     (1, 4H)      b_ih + b_hh, g-gate columns pre-scaled by 2
    gamma/beta:(1, H)       LayerNorm affine
    wfc_ref:   (H, C)       final Linear weight (transposed)
    bfc_ref:   (1, C)
    out_ref:   (Bp, C)
    gates_ref: (T*Bp, 4H)   VMEM scratch holding the hoisted input projection
    """
    H = whh_ref.shape[0]
    Bp = out_ref.shape[0]
    T = x_ref.shape[0] // Bp

    # --- hoisted input projection: one MXU pass for all time steps, biases folded in.
    #     Stored to VMEM scratch so the unrolled loop reads one (Bp,4H) tile per step
    #     instead of pinning a (128,128) live value in vregs.
    gates_ref[...] = (jnp.dot(x_ref[...], wih_ref[...],
                              preferred_element_type=jnp.float32)
                      + b_ref[...])                                  # (T*Bp, 4H)

    whh = whh_ref[...]                                               # hoisted RHS value
    h = jnp.zeros((Bp, H), jnp.float32)
    c = jnp.zeros((Bp, H), jnp.float32)

    # --- recurrence: fully unrolled (T static, small) so all slices are static/aligned ---
    for t in range(T):
        gates = (gates_ref[t * Bp:(t + 1) * Bp, :]                   # static tile read (vld slot)
                 + jnp.dot(h, whh, preferred_element_type=jnp.float32))   # (Bp, 4H)
        s = jax.nn.sigmoid(gates)            # ONE full-vreg EUP pass for all four gates
        i_g = s[:, 0:H]
        f_g = s[:, H:2 * H]
        g_g = 2.0 * s[:, 2 * H:3 * H] - 1.0  # tanh(x) = 2*sigmoid(2x)-1 (g cols pre-scaled by 2)
        o_g = s[:, 3 * H:4 * H]
        c = f_g * c + i_g * g_g
        h = o_g * jnp.tanh(c)

    # --- head: h[-1] -> LayerNorm(H) -> ReLU -> Linear ---
    mu = jnp.mean(h, axis=-1, keepdims=True)
    var = jnp.mean((h - mu) ** 2, axis=-1, keepdims=True)
    hn = (h - mu) * lax.rsqrt(var + 1e-5)
    hn = hn * gamma_ref[...] + beta_ref[...]
    act = jnp.maximum(hn, 0.0)                                       # ReLU
    out_ref[...] = (jnp.dot(act, wfc_ref[...], preferred_element_type=jnp.float32)
                    + bfc_ref[...]).astype(out_ref.dtype)


def prepare_params(params):
    """One-time parameter prep (off the per-call hot path):
       * fold the two LSTM biases into one,
       * pre-scale the g-gate (cell candidate) columns of W_ih^T / W_hh^T / b by 2 so the
         kernel needs only a single full-vreg sigmoid per step (tanh(x) = 2*sigmoid(2x) - 1)."""
    wih_T, whh_T, bih, bhh, gamma, beta, wfc_T, bfc = params
    H = whh_T.shape[0]
    b = bih + bhh
    scale = jnp.ones((1, 4 * H), jnp.float32).at[:, 2 * H:3 * H].set(2.0)
    return (wih_T * scale, whh_T * scale, b * scale, gamma, beta, wfc_T, bfc)


@jax.jit
def lstm_forward(x, prepped):
    """x: (B, input_size, T) float32 — same layout the torch module's forward receives.
    prepped: output of prepare_params (biases folded, g-gate columns pre-scaled)."""
    B, D, T = x.shape
    wih_s, whh_s, b_s, gamma, beta, wfc_T, bfc = prepped
    H = whh_s.shape[0]
    C = wfc_T.shape[1]

    # Pad batch to a sublane multiple so per-step gate slices / MXU LHS are tile aligned.
    Bp = ((B + 7) // 8) * 8

    # Relayout fused under the SAME jit as the kernel: (B,D,T) -> time-major (T*Bp, D) slab.
    x_tbd = jnp.transpose(x, (2, 0, 1))                              # (T, B, D)
    x_slab = jnp.zeros((T, Bp, D), x.dtype).at[:, :B, :].set(x_tbd).reshape(T * Bp, D)

    vmem = pl.BlockSpec(memory_space=pltpu.MemorySpace.VMEM)

    flops = (2 * T * Bp * D * 4 * H          # input projection
             + 2 * T * Bp * H * 4 * H        # recurrence matmuls
             + 2 * Bp * H * C)               # head linear
    transcendentals = T * (Bp * 4 * H + Bp * H)   # sigmoid(gates) + tanh(c) per step
    bytes_accessed = 4 * (T * Bp * D + D * 4 * H + H * 4 * H + 4 * H
                          + 2 * H + H * C + C + Bp * C)

    out_padded = pl.pallas_call(
        lstm_kernel,
        out_shape=jax.ShapeDtypeStruct((Bp, C), jnp.float32),
        # No grid: single invocation, everything whole-array resident in VMEM (~130 KiB total).
        in_specs=[vmem] * 8,
        out_specs=vmem,
        scratch_shapes=[pltpu.VMEM((T * Bp, 4 * H), jnp.float32)],
        cost_estimate=pl.CostEstimate(flops=flops,
                                      transcendentals=transcendentals,
                                      bytes_accessed=bytes_accessed),
    )(x_slab, wih_s, whh_s, b_s, gamma, beta, wfc_T, bfc)

    # Slice stays inside the jit (no extra dispatch).  Consumers that can work on the padded
    # slab may return out_padded directly instead.
    return out_padded[:B]


def reference_forward(x, params):
    """Pure-JAX reference of the same forward (for correctness check), on the RAW params."""
    wih_T, whh_T, bih, bhh, gamma, beta, wfc_T, bfc = params
    B, D, T = x.shape
    H = whh_T.shape[0]
    xs = jnp.transpose(x, (2, 0, 1))  # (T, B, D)

    def step(carry, x_t):
        h, c = carry
        gates = x_t @ wih_T + h @ whh_T + bih + bhh
        i = jax.nn.sigmoid(gates[:, 0:H])
        f = jax.nn.sigmoid(gates[:, H:2 * H])
        g = jnp.tanh(gates[:, 2 * H:3 * H])
        o = jax.nn.sigmoid(gates[:, 3 * H:4 * H])
        c = f * c + i * g
        h = o * jnp.tanh(c)
        return (h, c), None

    h0 = jnp.zeros((B, H), jnp.float32)
    (h, _), _ = lax.scan(step, (h0, h0), xs)
    mu = jnp.mean(h, axis=-1, keepdims=True)
    var = jnp.mean((h - mu) ** 2, axis=-1, keepdims=True)
    hn = (h - mu) * lax.rsqrt(var + 1e-5) * gamma + beta
    act = jnp.maximum(hn, 0.0)
    return act @ wfc_T + bfc


def init_params(key, input_size, hidden_size, num_classes):
    """Deterministic init mimicking PyTorch's U(-1/sqrt(H), 1/sqrt(H)) scheme."""
    H = hidden_size
    k = 1.0 / jnp.sqrt(jnp.float32(H))
    keys = jax.random.split(key, 6)
    wih_T = jax.random.uniform(keys[0], (input_size, 4 * H), jnp.float32, -k, k)
    whh_T = jax.random.uniform(keys[1], (H, 4 * H), jnp.float32, -k, k)
    bih = jax.random.uniform(keys[2], (1, 4 * H), jnp.float32, -k, k)
    bhh = jax.random.uniform(keys[3], (1, 4 * H), jnp.float32, -k, k)
    gamma = jnp.ones((1, H), jnp.float32)
    beta = jnp.zeros((1, H), jnp.float32)
    wfc_T = jax.random.uniform(keys[4], (H, num_classes), jnp.float32, -k, k)
    bfc = jax.random.uniform(keys[5], (1, num_classes), jnp.float32, -k, k)
    return (wih_T, whh_T, bih, bhh, gamma, beta, wfc_T, bfc)


if __name__ == "__main__":
    # Small shapes consistent with the module's forward: x is (batch, input_size, seq_len)
    B, INPUT_SIZE, T = 2, 8, 16
    HIDDEN, NUM_CLASSES = 32, 8

    key = jax.random.PRNGKey(0)
    kx, kp = jax.random.split(key)
    x = jax.random.normal(kx, (B, INPUT_SIZE, T), jnp.float32)
    params = init_params(kp, INPUT_SIZE, HIDDEN, NUM_CLASSES)

    # One-time parameter prep (bias fold + g-gate pre-scale) — not on the per-call path.
    prepped = jax.tree_util.tree_map(jax.block_until_ready, prepare_params(params))

    out = lstm_forward(x, prepped)
    out = jax.block_until_ready(out)

    ref = reference_forward(x, params)
    assert out.shape == (B, NUM_CLASSES)
    assert jnp.allclose(out, ref, atol=1e-4, rtol=1e-4), "mismatch vs JAX reference"

    print("KERNEL_OK")
</pallas_src>

<mosaic_0001>
module attributes {stable_mosaic.version = 11 : i64} {
  func.func @lstm_kernel(%arg0: memref<128x8xf32, #tpu.memory_space<vmem>>, %arg1: memref<8x128xf32, #tpu.memory_space<vmem>>, %arg2: memref<32x128xf32, #tpu.memory_space<vmem>>, %arg3: memref<1x128xf32, #tpu.memory_space<vmem>>, %arg4: memref<1x32xf32, #tpu.memory_space<vmem>>, %arg5: memref<1x32xf32, #tpu.memory_space<vmem>>, %arg6: memref<32x8xf32, #tpu.memory_space<vmem>>, %arg7: memref<1x8xf32, #tpu.memory_space<vmem>>, %arg8: memref<8x8xf32, #tpu.memory_space<vmem>>, %arg9: memref<128x128xf32, #tpu.memory_space<vmem>>) attributes {dimension_semantics = [], scalar_prefetch = 0 : i64, scratch_operands = 1 : i64, tpu.core_type = #tpu.core_type<tc>} {
    %c0 = arith.constant 0 : index
    %c0_0 = arith.constant 0 : index
    %0 = vector.load %arg0[%c0, %c0_0] : memref<128x8xf32, #tpu.memory_space<vmem>>, vector<128x8xf32>
    %c0_1 = arith.constant 0 : index
    %c0_2 = arith.constant 0 : index
    %1 = vector.load %arg1[%c0_1, %c0_2] : memref<8x128xf32, #tpu.memory_space<vmem>>, vector<8x128xf32>
    %cst = arith.constant dense<0.000000e+00> : vector<128x128xf32>
    %2 = tpu.matmul %0, %1, %cst {dimension_numbers = #tpu.dot_dimension_numbers<[1], [0], [0], [1], [0, 0, 1, 1], [], []>} : vector<128x8xf32>, vector<8x128xf32>, vector<128x128xf32> -> vector<128x128xf32>
    %c0_3 = arith.constant 0 : index
    %c0_4 = arith.constant 0 : index
    %3 = vector.load %arg3[%c0_3, %c0_4] : memref<1x128xf32, #tpu.memory_space<vmem>>, vector<1x128xf32>
    %4 = vector.broadcast %3 : vector<1x128xf32> to vector<128x128xf32>
    %5 = arith.addf %2, %4 : vector<128x128xf32>
    %c0_5 = arith.constant 0 : index
    %c0_6 = arith.constant 0 : index
    %6 = vector.load %arg9[%c0_5, %c0_6] : memref<128x128xf32, #tpu.memory_space<vmem>>, vector<128x128xf32>
    tpu.vector_store %arg9[%c0_5, %c0_6], %5 {strides = array<i32>} : memref<128x128xf32, #tpu.memory_space<vmem>>, vector<128x128xf32>,
    %c0_7 = arith.constant 0 : index
    %c0_8 = arith.constant 0 : index
    %7 = vector.load %arg2[%c0_7, %c0_8] : memref<32x128xf32, #tpu.memory_space<vmem>>, vector<32x128xf32>
    %cst_9 = arith.constant 0.000000e+00 : f32
    %8 = vector.broadcast %cst_9 : f32 to vector<8x32xf32>
    %cst_10 = arith.constant 0.000000e+00 : f32
    %9 = vector.broadcast %cst_10 : f32 to vector<8x32xf32>
    %c0_11 = arith.constant 0 : index
    %c0_12 = arith.constant 0 : index
    %10 = vector.load %arg9[%c0_11, %c0_12] : memref<128x128xf32, #tpu.memory_space<vmem>>, vector<8x128xf32>
    %cst_13 = arith.constant dense<0.000000e+00> : vector<8x128xf32>
    %11 = tpu.matmul %8, %7, %cst_13 {dimension_numbers = #tpu.dot_dimension_numbers<[1], [0], [0], [1], [0, 0, 1, 1], [], []>} : vector<8x32xf32>, vector<32x128xf32>, vector<8x128xf32> -> vector<8x128xf32>
    %12 = arith.addf %10, %11 : vector<8x128xf32>
    %13 = arith.negf %12 : vector<8x128xf32>
    %14 = math.exp %13 : vector<8x128xf32>
    %cst_14 = arith.constant 1.000000e+00 : f32
    %15 = vector.broadcast %cst_14 : f32 to vector<8x128xf32>
    %16 = arith.addf %15, %14 : vector<8x128xf32>
    %17 = arith.divf %15, %16 : vector<8x128xf32>
    %18 = vector.extract_strided_slice %17 {offsets = [0, 0], sizes = [8, 32], strides = [1, 1]} : vector<8x128xf32> to vector<8x32xf32>
    %19 = vector.extract_strided_slice %17 {offsets = [0, 32], sizes = [8, 32], strides = [1, 1]} : vector<8x128xf32> to vector<8x32xf32>
    %20 = vector.extract_strided_slice %17 {offsets = [0, 64], sizes = [8, 32], strides = [1, 1]} : vector<8x128xf32> to vector<8x32xf32>
    %cst_15 = arith.constant 2.000000e+00 : f32
    %21 = vector.broadcast %cst_15 : f32 to vector<8x32xf32>
    %22 = arith.mulf %21, %20 : vector<8x32xf32>
    %cst_16 = arith.constant 1.000000e+00 : f32
    %23 = vector.broadcast %cst_16 : f32 to vector<8x32xf32>
    %24 = arith.subf %22, %23 : vector<8x32xf32>
    %25 = vector.extract_strided_slice %17 {offsets = [0, 96], sizes = [8, 32], strides = [1, 1]} : vector<8x128xf32> to vector<8x32xf32>
    %26 = arith.mulf %19, %9 : vector<8x32xf32>
    %27 = arith.mulf %18, %24 : vector<8x32xf32>
    %28 = arith.addf %26, %27 : vector<8x32xf32>
    %29 = math.tanh %28 : vector<8x32xf32>
    %30 = arith.mulf %25, %29 : vector<8x32xf32>
    %c8 = arith.constant 8 : index
    %c0_17 = arith.constant 0 : index
    %31 = vector.load %arg9[%c8, %c0_17] : memref<128x128xf32, #tpu.memory_space<vmem>>, vector<8x128xf32>
    %cst_18 = arith.constant dense<0.000000e+00> : vector<8x128xf32>
    %32 = tpu.matmul %30, %7, %cst_18 {dimension_numbers = #tpu.dot_dimension_numbers<[1], [0], [0], [1], [0, 0, 1, 1], [], []>} : vector<8x32xf32>, vector<32x128xf32>, vector<8x128xf32> -> vector<8x128xf32>
    %33 = arith.addf %31, %32 : vector<8x128xf32>
    %34 = arith.negf %33 : vector<8x128xf32>
    %35 = math.exp %34 : vector<8x128xf32>
    %cst_19 = arith.constant 1.000000e+00 : f32
    %36 = vector.broadcast %cst_19 : f32 to vector<8x128xf32>
    %37 = arith.addf %36, %35 : vector<8x128xf32>
    %38 = arith.divf %36, %37 : vector<8x128xf32>
    %39 = vector.extract_strided_slice %38 {offsets = [0, 0], sizes = [8, 32], strides = [1, 1]} : vector<8x128xf32> to vector<8x32xf32>
    %40 = vector.extract_strided_slice %38 {offsets = [0, 32], sizes = [8, 32], strides = [1, 1]} : vector<8x128xf32> to vector<8x32xf32>
    %41 = vector.extract_strided_slice %38 {offsets = [0, 64], sizes = [8, 32], strides = [1, 1]} : vector<8x128xf32> to vector<8x32xf32>
    %cst_20 = arith.constant 2.000000e+00 : f32
    %42 = vector.broadcast %cst_20 : f32 to vector<8x32xf32>
    %43 = arith.mulf %42, %41 : vector<8x32xf32>
    %cst_21 = arith.constant 1.000000e+00 : f32
    %44 = vector.broadcast %cst_21 : f32 to vector<8x32xf32>
    %45 = arith.subf %43, %44 : vector<8x32xf32>
    %46 = vector.extract_strided_slice %38 {offsets = [0, 96], sizes = [8, 32], strides = [1, 1]} : vector<8x128xf32> to vector<8x32xf32>
    %47 = arith.mulf %40, %28 : vector<8x32xf32>
    %48 = arith.mulf %39, %45 : vector<8x32xf32>
    %49 = arith.addf %47, %48 : vector<8x32xf32>
    %50 = math.tanh %49 : vector<8x32xf32>
    %51 = arith.mulf %46, %50 : vector<8x32xf32>
    %c16 = arith.constant 16 : index
    %c0_22 = arith.constant 0 : index
    %52 = vector.load %arg9[%c16, %c0_22] : memref<128x128xf32, #tpu.memory_space<vmem>>, vector<8x128xf32>
    %cst_23 = arith.constant dense<0.000000e+00> : vector<8x128xf32>
    %53 = tpu.matmul %51, %7, %cst_23 {dimension_numbers = #tpu.dot_dimension_numbers<[1], [0], [0], [1], [0, 0, 1, 1], [], []>} : vector<8x32xf32>, vector<32x128xf32>, vector<8x128xf32> -> vector<8x128xf32>
    %54 = arith.addf %52, %53 : vector<8x128xf32>
    %55 = arith.negf %54 : vector<8x128xf32>
    %56 = math.exp %55 : vector<8x128xf32>
    %cst_24 = arith.constant 1.000000e+00 : f32
    %57 = vector.broadcast %cst_24 : f32 to vector<8x128xf32>
    %58 = arith.addf %57, %56 : vector<8x128xf32>
    %59 = arith.divf %57, %58 : vector<8x128xf32>
    %60 = vector.extract_strided_slice %59 {offsets = [0, 0], sizes = [8, 32], strides = [1, 1]} : vector<8x128xf32> to vector<8x32xf32>
    %61 = vector.extract_strided_slice %59 {offsets = [0, 32], sizes = [8, 32], strides = [1, 1]} : vector<8x128xf32> to vector<8x32xf32>
    %62 = vector.extract_strided_slice %59 {offsets = [0, 64], sizes = [8, 32], strides = [1, 1]} : vector<8x128xf32> to vector<8x32xf32>
    %cst_25 = arith.constant 2.000000e+00 : f32
    %63 = vector.broadcast %cst_25 : f32 to vector<8x32xf32>
    %64 = arith.mulf %63, %62 : vector<8x32xf32>
    %cst_26 = arith.constant 1.000000e+00 : f32
    %65 = vector.broadcast %cst_26 : f32 to vector<8x32xf32>
    %66 = arith.subf %64, %65 : vector<8x32xf32>
    %67 = vector.extract_strided_slice %59 {offsets = [0, 96], sizes = [8, 32], strides = [1, 1]} : vector<8x128xf32> to vector<8x32xf32>
    %68 = arith.mulf %61, %49 : vector<8x32xf32>
    %69 = arith.mulf %60, %66 : vector<8x32xf32>
    %70 = arith.addf %68, %69 : vector<8x32xf32>
    %71 = math.tanh %70 : vector<8x32xf32>
    %72 = arith.mulf %67, %71 : vector<8x32xf32>
    %c24 = arith.constant 24 : index
    %c0_27 = arith.constant 0 : index
    %73 = vector.load %arg9[%c24, %c0_27] : memref<128x128xf32, #tpu.memory_space<vmem>>, vector<8x128xf32>
    %cst_28 = arith.constant dense<0.000000e+00> : vector<8x128xf32>
    %74 = tpu.matmul %72, %7, %cst_28 {dimension_numbers = #tpu.dot_dimension_numbers<[1], [0], [0], [1], [0, 0, 1, 1], [], []>} : vector<8x32xf32>, vector<32x128xf32>, vector<8x128xf32> -> vector<8x128xf32>
    %75 = arith.addf %73, %74 : vector<8x128xf32>
    %76 = arith.negf %75 : vector<8x128xf32>
    %77 = math.exp %76 : vector<8x128xf32>
    %cst_29 = arith.constant 1.000000e+00 : f32
    %78 = vector.broadcast %cst_29 : f32 to vector<8x128xf32>
    %79 = arith.addf %78, %77 : vector<8x128xf32>
    %80 = arith.divf %78, %79 : vector<8x128xf32>
    %81 = vector.extract_strided_slice %80 {offsets = [0, 0], sizes = [8, 32], strides = [1, 1]} : vector<8x128xf32> to vector<8x32xf32>
    %82 = vector.extract_strided_slice %80 {offsets = [0, 32], sizes = [8, 32], strides = [1, 1]} : vector<8x128xf32> to vector<8x32xf32>
    %83 = vector.extract_strided_slice %80 {offsets = [0, 64], sizes = [8, 32], strides = [1, 1]} : vector<8x128xf32> to vector<8x32xf32>
    %cst_30 = arith.constant 2.000000e+00 : f32
    %84 = vector.broadcast %cst_30 : f32 to vector<8x32xf32>
    %85 = arith.mulf %84, %83 : vector<8x32xf32>
    %cst_31 = arith.constant 1.000000e+00 : f32
    %86 = vector.broadcast %cst_31 : f32 to vector<8x32xf32>
    %87 = arith.subf %85, %86 : vector<8x32xf32>
    %88 = vector.extract_strided_slice %80 {offsets = [0, 96], sizes = [8, 32], strides = [1, 1]} : vector<8x128xf32> to vector<8x32xf32>
    %89 = arith.mulf %82, %70 : vector<8x32xf32>
    %90 = arith.mulf %81, %87 : vector<8x32xf32>
    %91 = arith.addf %89, %90 : vector<8x32xf32>
    %92 = math.tanh %91 : vector<8x32xf32>
    %93 = arith.mulf %88, %92 : vector<8x32xf32>
    %c32 = arith.constant 32 : index
    %c0_32 = arith.constant 0 : index
    %94 = vector.load %arg9[%c32, %c0_32] : memref<128x128xf32, #tpu.memory_space<vmem>>, vector<8x128xf32>
    %cst_33 = arith.constant dense<0.000000e+00> : vector<8x128xf32>
    %95 = tpu.matmul %93, %7, %cst_33 {dimension_numbers = #tpu.dot_dimension_numbers<[1], [0], [0], [1], [0, 0, 1, 1], [], []>} : vector<8x32xf32>, vector<32x128xf32>, vector<8x128xf32> -> vector<8x128xf32>
    %96 = arith.addf %94, %95 : vector<8x128xf32>
    %97 = arith.negf %96 : vector<8x128xf32>
    %98 = math.exp %97 : vector<8x128xf32>
    %cst_34 = arith.constant 1.000000e+00 : f32
    %99 = vector.broadcast %cst_34 : f32 to vector<8x128xf32>
    %100 = arith.addf %99, %98 : vector<8x128xf32>
    %101 = arith.divf %99, %100 : vector<8x128xf32>
    %102 = vector.extract_strided_slice %101 {offsets = [0, 0], sizes = [8, 32], strides = [1, 1]} : vector<8x128xf32> to vector<8x32xf32>
    %103 = vector.extract_strided_slice %101 {offsets = [0, 32], sizes = [8, 32], strides = [1, 1]} : vector<8x128xf32> to vector<8x32xf32>
    %104 = vector.extract_strided_slice %101 {offsets = [0, 64], sizes = [8, 32], strides = [1, 1]} : vector<8x128xf32> to vector<8x32xf32>
    %cst_35 = arith.constant 2.000000e+00 : f32
    %105 = vector.broadcast %cst_35 : f32 to vector<8x32xf32>
    %106 = arith.mulf %105, %104 : vector<8x32xf32>
    %cst_36 = arith.constant 1.000000e+00 : f32
    %107 = vector.broadcast %cst_36 : f32 to vector<8x32xf32>
    %108 = arith.subf %106, %107 : vector<8x32xf32>
    %109 = vector.extract_strided_slice %101 {offsets = [0, 96], sizes = [8, 32], strides = [1, 1]} : vector<8x128xf32> to vector<8x32xf32>
    %110 = arith.mulf %103, %91 : vector<8x32xf32>
    %111 = arith.mulf %102, %108 : vector<8x32xf32>
    %112 = arith.addf %110, %111 : vector<8x32xf32>
    %113 = math.tanh %112 : vector<8x32xf32>
    %114 = arith.mulf %109, %113 : vector<8x32xf32>
    %c40 = arith.constant 40 : index
    %c0_37 = arith.constant 0 : index
    %115 = vector.load %arg9[%c40, %c0_37] : memref<128x128xf32, #tpu.memory_space<vmem>>, vector<8x128xf32>
    %cst_38 = arith.constant dense<0.000000e+00> : vector<8x128xf32>
    %116 = tpu.matmul %114, %7, %cst_38 {dimension_numbers = #tpu.dot_dimension_numbers<[1], [0], [0], [1], [0, 0, 1, 1], [], []>} : vector<8x32xf32>, vector<32x128xf32>, vector<8x128xf32> -> vector<8x128xf32>
    %117 = arith.addf %115, %116 : vector<8x128xf32>
    %118 = arith.negf %117 : vector<8x128xf32>
    %119 = math.exp %118 : vector<8x128xf32>
    %cst_39 = arith.constant 1.000000e+00 : f32
    %120 = vector.broadcast %cst_39 : f32 to vector<8x128xf32>
    %121 = arith.addf %120, %119 : vector<8x128xf32>
    %122 = arith.divf %120, %121 : vector<8x128xf32>
    %123 = vector.extract_strided_slice %122 {offsets = [0, 0], sizes = [8, 32], strides = [1, 1]} : vector<8x128xf32> to vector<8x32xf32>
    %124 = vector.extract_strided_slice %122 {offsets = [0, 32], sizes = [8, 32], strides = [1, 1]} : vector<8x128xf32> to vector<8x32xf32>
    %125 = vector.extract_strided_slice %122 {offsets = [0, 64], sizes = [8, 32], strides = [1, 1]} : vector<8x128xf32> to vector<8x32xf32>
    %cst_40 = arith.constant 2.000000e+00 : f32
    %126 = vector.broadcast %cst_40 : f32 to vector<8x32xf32>
    %127 = arith.mulf %126, %125 : vector<8x32xf32>
    %cst_41 = arith.constant 1.000000e+00 : f32
    %128 = vector.broadcast %cst_41 : f32 to vector<8x32xf32>
    %129 = arith.subf %127, %128 : vector<8x32xf32>
    %130 = vector.extract_strided_slice %122 {offsets = [0, 96], sizes = [8, 32], strides = [1, 1]} : vector<8x128xf32> to vector<8x32xf32>
    %131 = arith.mulf %124, %112 : vector<8x32xf32>
    %132 = arith.mulf %123, %129 : vector<8x32xf32>
    %133 = arith.addf %131, %132 : vector<8x32xf32>
    %134 = math.tanh %133 : vector<8x32xf32>
    %135 = arith.mulf %130, %134 : vector<8x32xf32>
    %c48 = arith.constant 48 : index
    %c0_42 = arith.constant 0 : index
    %136 = vector.load %arg9[%c48, %c0_42] : memref<128x128xf32, #tpu.memory_space<vmem>>, vector<8x128xf32>
    %cst_43 = arith.constant dense<0.000000e+00> : vector<8x128xf32>
    %137 = tpu.matmul %135, %7, %cst_43 {dimension_numbers = #tpu.dot_dimension_numbers<[1], [0], [0], [1], [0, 0, 1, 1], [], []>} : vector<8x32xf32>, vector<32x128xf32>, vector<8x128xf32> -> vector<8x128xf32>
    %138 = arith.addf %136, %137 : vector<8x128xf32>
    %139 = arith.negf %138 : vector<8x128xf32>
    %140 = math.exp %139 : vector<8x128xf32>
    %cst_44 = arith.constant 1.000000e+00 : f32
    %141 = vector.broadcast %cst_44 : f32 to vector<8x128xf32>
    %142 = arith.addf %141, %140 : vector<8x128xf32>
    %143 = arith.divf %141, %142 : vector<8x128xf32>
    %144 = vector.extract_strided_slice %143 {offsets = [0, 0], sizes = [8, 32], strides = [1, 1]} : vector<8x128xf32> to vector<8x32xf32>
    %145 = vector.extract_strided_slice %143 {offsets = [0, 32], sizes = [8, 32], strides = [1, 1]} : vector<8x128xf32> to vector<8x32xf32>
    %146 = vector.extract_strided_slice %143 {offsets = [0, 64], sizes = [8, 32], strides = [1, 1]} : vector<8x128xf32> to vector<8x32xf32>
    %cst_45 = arith.constant 2.000000e+00 : f32
    %147 = vector.broadcast %cst_45 : f32 to vector<8x32xf32>
    %148 = arith.mulf %147, %146 : vector<8x32xf32>
    %cst_46 = arith.constant 1.000000e+00 : f32
    %149 = vector.broadcast %cst_46 : f32 to vector<8x32xf32>
    %150 = arith.subf %148, %149 : vector<8x32xf32>
    %151 = vector.extract_strided_slice %143 {offsets = [0, 96], sizes = [8, 32], strides = [1, 1]} : vector<8x128xf32> to vector<8x32xf32>
    %152 = arith.mulf %145, %133 : vector<8x32xf32>
    %153 = arith.mulf %144, %150 : vector<8x32xf32>
    %154 = arith.addf %152, %153 : vector<8x32xf32>
    %155 = math.tanh %154 : vector<8x32xf32>
    %156 = arith.mulf %151, %155 : vector<8x32xf32>
    %c56 = arith.constant 56 : index
    %c0_47 = arith.constant 0 : index
    %157 = vector.load %arg9[%c56, %c0_47] : memref<128x128xf32, #tpu.memory_space<vmem>>, vector<8x128xf32>
    %cst_48 = arith.constant dense<0.000000e+00> : vector<8x128xf32>
    %158 = tpu.matmul %156, %7, %cst_48 {dimension_numbers = #tpu.dot_dimension_numbers<[1], [0], [0], [1], [0, 0, 1, 1], [], []>} : vector<8x32xf32>, vector<32x128xf32>, vector<8x128xf32> -> vector<8x128xf32>
    %159 = arith.addf %157, %158 : vector<8x128xf32>
    %160 = arith.negf %159 : vector<8x128xf32>
    %161 = math.exp %160 : vector<8x128xf32>
    %cst_49 = arith.constant 1.000000e+00 : f32
    %162 = vector.broadcast %cst_49 : f32 to vector<8x128xf32>
    %163 = arith.addf %162, %161 : vector<8x128xf32>
    %164 = arith.divf %162, %163 : vector<8x128xf32>
    %165 = vector.extract_strided_slice %164 {offsets = [0, 0], sizes = [8, 32], strides = [1, 1]} : vector<8x128xf32> to vector<8x32xf32>
    %166 = vector.extract_strided_slice %164 {offsets = [0, 32], sizes = [8, 32], strides = [1, 1]} : vector<8x128xf32> to vector<8x32xf32>
    %167 = vector.extract_strided_slice %164 {offsets = [0, 64], sizes = [8, 32], strides = [1, 1]} : vector<8x128xf32> to vector<8x32xf32>
    %cst_50 = arith.constant 2.000000e+00 : f32
    %168 = vector.broadcast %cst_50 : f32 to vector<8x32xf32>
    %169 = arith.mulf %168, %167 : vector<8x32xf32>
    %cst_51 = arith.constant 1.000000e+00 : f32
    %170 = vector.broadcast %cst_51 : f32 to vector<8x32xf32>
    %171 = arith.subf %169, %170 : vector<8x32xf32>
    %172 = vector.extract_strided_slice %164 {offsets = [0, 96], sizes = [8, 32], strides = [1, 1]} : vector<8x128xf32> to vector<8x32xf32>
    %173 = arith.mulf %166, %154 : vector<8x32xf32>
    %174 = arith.mulf %165, %171 : vector<8x32xf32>
    %175 = arith.addf %173, %174 : vector<8x32xf32>
    %176 = math.tanh %175 : vector<8x32xf32>
    %177 = arith.mulf %172, %176 : vector<8x32xf32>
    %c64 = arith.constant 64 : index
    %c0_52 = arith.constant 0 : index
    %178 = vector.load %arg9[%c64, %c0_52] : memref<128x128xf32, #tpu.memory_space<vmem>>, vector<8x128xf32>
    %cst_53 = arith.constant dense<0.000000e+00> : vector<8x128xf32>
    %179 = tpu.matmul %177, %7, %cst_53 {dimension_numbers = #tpu.dot_dimension_numbers<[1], [0], [0], [1], [0, 0, 1, 1], [], []>} : vector<8x32xf32>, vector<32x128xf32>, vector<8x128xf32> -> vector<8x128xf32>
    %180 = arith.addf %178, %179 : vector<8x128xf32>
    %181 = arith.negf %180 : vector<8x128xf32>
    %182 = math.exp %181 : vector<8x128xf32>
    %cst_54 = arith.constant 1.000000e+00 : f32
    %183 = vector.broadcast %cst_54 : f32 to vector<8x128xf32>
    %184 = arith.addf %183, %182 : vector<8x128xf32>
    %185 = arith.divf %183, %184 : vector<8x128xf32>
    %186 = vector.extract_strided_slice %185 {offsets = [0, 0], sizes = [8, 32], strides = [1, 1]} : vector<8x128xf32> to vector<8x32xf32>
    %187 = vector.extract_strided_slice %185 {offsets = [0, 32], sizes = [8, 32], strides = [1, 1]} : vector<8x128xf32> to vector<8x32xf32>
    %188 = vector.extract_strided_slice %185 {offsets = [0, 64], sizes = [8, 32], strides = [1, 1]} : vector<8x128xf32> to vector<8x32xf32>
    %cst_55 = arith.constant 2.000000e+00 : f32
    %189 = vector.broadcast %cst_55 : f32 to vector<8x32xf32>
    %190 = arith.mulf %189, %188 : vector<8x32xf32>
    %cst_56 = arith.constant 1.000000e+00 : f32
    %191 = vector.broadcast %cst_56 : f32 to vector<8x32xf32>
    %192 = arith.subf %190, %191 : vector<8x32xf32>
    %193 = vector.extract_strided_slice %185 {offsets = [0, 96], sizes = [8, 32], strides = [1, 1]} : vector<8x128xf32> to vector<8x32xf32>
    %194 = arith.mulf %187, %175 : vector<8x32xf32>
    %195 = arith.mulf %186, %192 : vector<8x32xf32>
    %196 = arith.addf %194, %195 : vector<8x32xf32>
    %197 = math.tanh %196 : vector<8x32xf32>
    %198 = arith.mulf %193, %197 : vector<8x32xf32>
    %c72 = arith.constant 72 : index
    %c0_57 = arith.constant 0 : index
    %199 = vector.load %arg9[%c72, %c0_57] : memref<128x128xf32, #tpu.memory_space<vmem>>, vector<8x128xf32>
    %cst_58 = arith.constant dense<0.000000e+00> : vector<8x128xf32>
    %200 = tpu.matmul %198, %7, %cst_58 {dimension_numbers = #tpu.dot_dimension_numbers<[1], [0], [0], [1], [0, 0, 1, 1], [], []>} : vector<8x32xf32>, vector<32x128xf32>, vector<8x128xf32> -> vector<8x128xf32>
    %201 = arith.addf %199, %200 : vector<8x128xf32>
    %202 = arith.negf %201 : vector<8x128xf32>
    %203 = math.exp %202 : vector<8x128xf32>
    %cst_59 = arith.constant 1.000000e+00 : f32
    %204 = vector.broadcast %cst_59 : f32 to vector<8x128xf32>
    %205 = arith.addf %204, %203 : vector<8x128xf32>
    %206 = arith.divf %204, %205 : vector<8x128xf32>
    %207 = vector.extract_strided_slice %206 {offsets = [0, 0], sizes = [8, 32], strides = [1, 1]} : vector<8x128xf32> to vector<8x32xf32>
    %208 = vector.extract_strided_slice %206 {offsets = [0, 32], sizes = [8, 32], strides = [1, 1]} : vector<8x128xf32> to vector<8x32xf32>
    %209 = vector.extract_strided_slice %206 {offsets = [0, 64], sizes = [8, 32], strides = [1, 1]} : vector<8x128xf32> to vector<8x32xf32>
    %cst_60 = arith.constant 2.000000e+00 : f32
    %210 = vector.broadcast %cst_60 : f32 to vector<8x32xf32>
    %211 = arith.mulf %210, %209 : vector<8x32xf32>
    %cst_61 = arith.constant 1.000000e+00 : f32
    %212 = vector.broadcast %cst_61 : f32 to vector<8x32xf32>
    %213 = arith.subf %211, %212 : vector<8x32xf32>
    %214 = vector.extract_strided_slice %206 {offsets = [0, 96], sizes = [8, 32], strides = [1, 1]} : vector<8x128xf32> to vector<8x32xf32>
    %215 = arith.mulf %208, %196 : vector<8x32xf32>
    %216 = arith.mulf %207, %213 : vector<8x32xf32>
    %217 = arith.addf %215, %216 : vector<8x32xf32>
    %218 = math.tanh %217 : vector<8x32xf32>
    %219 = arith.mulf %214, %218 : vector<8x32xf32>
    %c80 = arith.constant 80 : index
    %c0_62 = arith.constant 0 : index
    %220 = vector.load %arg9[%c80, %c0_62] : memref<128x128xf32, #tpu.memory_space<vmem>>, vector<8x128xf32>
    %cst_63 = arith.constant dense<0.000000e+00> : vector<8x128xf32>
    %221 = tpu.matmul %219, %7, %cst_63 {dimension_numbers = #tpu.dot_dimension_numbers<[1], [0], [0], [1], [0, 0, 1, 1], [], []>} : vector<8x32xf32>, vector<32x128xf32>, vector<8x128xf32> -> vector<8x128xf32>
    %222 = arith.addf %220, %221 : vector<8x128xf32>
    %223 = arith.negf %222 : vector<8x128xf32>
    %224 = math.exp %223 : vector<8x128xf32>
    %cst_64 = arith.constant 1.000000e+00 : f32
    %225 = vector.broadcast %cst_64 : f32 to vector<8x128xf32>
    %226 = arith.addf %225, %224 : vector<8x128xf32>
    %227 = arith.divf %225, %226 : vector<8x128xf32>
    %228 = vector.extract_strided_slice %227 {offsets = [0, 0], sizes = [8, 32], strides = [1, 1]} : vector<8x128xf32> to vector<8x32xf32>
    %229 = vector.extract_strided_slice %227 {offsets = [0, 32], sizes = [8, 32], strides = [1, 1]} : vector<8x128xf32> to vector<8x32xf32>
    %230 = vector.extract_strided_slice %227 {offsets = [0, 64], sizes = [8, 32], strides = [1, 1]} : vector<8x128xf32> to vector<8x32xf32>
    %cst_65 = arith.constant 2.000000e+00 : f32
    %231 = vector.broadcast %cst_65 : f32 to vector<8x32xf32>
    %232 = arith.mulf %231, %230 : vector<8x32xf32>
    %cst_66 = arith.constant 1.000000e+00 : f32
    %233 = vector.broadcast %cst_66 : f32 to vector<8x32xf32>
    %234 = arith.subf %232, %233 : vector<8x32xf32>
    %235 = vector.extract_strided_slice %227 {offsets = [0, 96], sizes = [8, 32], strides = [1, 1]} : vector<8x128xf32> to vector<8x32xf32>
    %236 = arith.mulf %229, %217 : vector<8x32xf32>
    %237 = arith.mulf %228, %234 : vector<8x32xf32>
    %238 = arith.addf %236, %237 : vector<8x32xf32>
    %239 = math.tanh %238 : vector<8x32xf32>
    %240 = arith.mulf %235, %239 : vector<8x32xf32>
    %c88 = arith.constant 88 : index
    %c0_67 = arith.constant 0 : index
    %241 = vector.load %arg9[%c88, %c0_67] : memref<128x128xf32, #tpu.memory_space<vmem>>, vector<8x128xf32>
    %cst_68 = arith.constant dense<0.000000e+00> : vector<8x128xf32>
    %242 = tpu.matmul %240, %7, %cst_68 {dimension_numbers = #tpu.dot_dimension_numbers<[1], [0], [0], [1], [0, 0, 1, 1], [], []>} : vector<8x32xf32>, vector<32x128xf32>, vector<8x128xf32> -> vector<8x128xf32>
    %243 = arith.addf %241, %242 : vector<8x128xf32>
    %244 = arith.negf %243 : vector<8x128xf32>
    %245 = math.exp %244 : vector<8x128xf32>
    %cst_69 = arith.constant 1.000000e+00 : f32
    %246 = vector.broadcast %cst_69 : f32 to vector<8x128xf32>
    %247 = arith.addf %246, %245 : vector<8x128xf32>
    %248 = arith.divf %246, %247 : vector<8x128xf32>
    %249 = vector.extract_strided_slice %248 {offsets = [0, 0], sizes = [8, 32], strides = [1, 1]} : vector<8x128xf32> to vector<8x32xf32>
    %250 = vector.extract_strided_slice %248 {offsets = [0, 32], sizes = [8, 32], strides = [1, 1]} : vector<8x128xf32> to vector<8x32xf32>
    %251 = vector.extract_strided_slice %248 {offsets = [0, 64], sizes = [8, 32], strides = [1, 1]} : vector<8x128xf32> to vector<8x32xf32>
    %cst_70 = arith.constant 2.000000e+00 : f32
    %252 = vector.broadcast %cst_70 : f32 to vector<8x32xf32>
    %253 = arith.mulf %252, %251 : vector<8x32xf32>
    %cst_71 = arith.constant 1.000000e+00 : f32
    %254 = vector.broadcast %cst_71 : f32 to vector<8x32xf32>
    %255 = arith.subf %253, %254 : vector<8x32xf32>
    %256 = vector.extract_strided_slice %248 {offsets = [0, 96], sizes = [8, 32], strides = [1, 1]} : vector<8x128xf32> to vector<8x32xf32>
    %257 = arith.mulf %250, %238 : vector<8x32xf32>
    %258 = arith.mulf %249, %255 : vector<8x32xf32>
    %259 = arith.addf %257, %258 : vector<8x32xf32>
    %260 = math.tanh %259 : vector<8x32xf32>
    %261 = arith.mulf %256, %260 : vector<8x32xf32>
    %c96 = arith.constant 96 : index
    %c0_72 = arith.constant 0 : index
    %262 = vector.load %arg9[%c96, %c0_72] : memref<128x128xf32, #tpu.memory_space<vmem>>, vector<8x128xf32>
    %cst_73 = arith.constant dense<0.000000e+00> : vector<8x128xf32>
    %263 = tpu.matmul %261, %7, %cst_73 {dimension_numbers = #tpu.dot_dimension_numbers<[1], [0], [0], [1], [0, 0, 1, 1], [], []>} : vector<8x32xf32>, vector<32x128xf32>, vector<8x128xf32> -> vector<8x128xf32>
    %264 = arith.addf %262, %263 : vector<8x128xf32>
    %265 = arith.negf %264 : vector<8x128xf32>
    %266 = math.exp %265 : vector<8x128xf32>
    %cst_74 = arith.constant 1.000000e+00 : f32
    %267 = vector.broadcast %cst_74 : f32 to vector<8x128xf32>
    %268 = arith.addf %267, %266 : vector<8x128xf32>
    %269 = arith.divf %267, %268 : vector<8x128xf32>
    %270 = vector.extract_strided_slice %269 {offsets = [0, 0], sizes = [8, 32], strides = [1, 1]} : vector<8x128xf32> to vector<8x32xf32>
    %271 = vector.extract_strided_slice %269 {offsets = [0, 32], sizes = [8, 32], strides = [1, 1]} : vector<8x128xf32> to vector<8x32xf32>
    %272 = vector.extract_strided_slice %269 {offsets = [0, 64], sizes = [8, 32], strides = [1, 1]} : vector<8x128xf32> to vector<8x32xf32>
    %cst_75 = arith.constant 2.000000e+00 : f32
    %273 = vector.broadcast %cst_75 : f32 to vector<8x32xf32>
    %274 = arith.mulf %273, %272 : vector<8x32xf32>
    %cst_76 = arith.constant 1.000000e+00 : f32
    %275 = vector.broadcast %cst_76 : f32 to vector<8x32xf32>
    %276 = arith.subf %274, %275 : vector<8x32xf32>
    %277 = vector.extract_strided_slice %269 {offsets = [0, 96], sizes = [8, 32], strides = [1, 1]} : vector<8x128xf32> to vector<8x32xf32>
    %278 = arith.mulf %271, %259 : vector<8x32xf32>
    %279 = arith.mulf %270, %276 : vector<8x32xf32>
    %280 = arith.addf %278, %279 : vector<8x32xf32>
    %281 = math.tanh %280 : vector<8x32xf32>
    %282 = arith.mulf %277, %281 : vector<8x32xf32>
    %c104 = arith.constant 104 : index
    %c0_77 = arith.constant 0 : index
    %283 = vector.load %arg9[%c104, %c0_77] : memref<128x128xf32, #tpu.memory_space<vmem>>, vector<8x128xf32>
    %cst_78 = arith.constant dense<0.000000e+00> : vector<8x128xf32>
    %284 = tpu.matmul %282, %7, %cst_78 {dimension_numbers = #tpu.dot_dimension_numbers<[1], [0], [0], [1], [0, 0, 1, 1], [], []>} : vector<8x32xf32>, vector<32x128xf32>, vector<8x128xf32> -> vector<8x128xf32>
    %285 = arith.addf %283, %284 : vector<8x128xf32>
    %286 = arith.negf %285 : vector<8x128xf32>
    %287 = math.exp %286 : vector<8x128xf32>
    %cst_79 = arith.constant 1.000000e+00 : f32
    %288 = vector.broadcast %cst_79 : f32 to vector<8x128xf32>
    %289 = arith.addf %288, %287 : vector<8x128xf32>
    %290 = arith.divf %288, %289 : vector<8x128xf32>
    %291 = vector.extract_strided_slice %290 {offsets = [0, 0], sizes = [8, 32], strides = [1, 1]} : vector<8x128xf32> to vector<8x32xf32>
    %292 = vector.extract_strided_slice %290 {offsets = [0, 32], sizes = [8, 32], strides = [1, 1]} : vector<8x128xf32> to vector<8x32xf32>
    %293 = vector.extract_strided_slice %290 {offsets = [0, 64], sizes = [8, 32], strides = [1, 1]} : vector<8x128xf32> to vector<8x32xf32>
    %cst_80 = arith.constant 2.000000e+00 : f32
    %294 = vector.broadcast %cst_80 : f32 to vector<8x32xf32>
    %295 = arith.mulf %294, %293 : vector<8x32xf32>
    %cst_81 = arith.constant 1.000000e+00 : f32
    %296 = vector.broadcast %cst_81 : f32 to vector<8x32xf32>
    %297 = arith.subf %295, %296 : vector<8x32xf32>
    %298 = vector.extract_strided_slice %290 {offsets = [0, 96], sizes = [8, 32], strides = [1, 1]} : vector<8x128xf32> to vector<8x32xf32>
    %299 = arith.mulf %292, %280 : vector<8x32xf32>
    %300 = arith.mulf %291, %297 : vector<8x32xf32>
    %301 = arith.addf %299, %300 : vector<8x32xf32>
    %302 = math.tanh %301 : vector<8x32xf32>
    %303 = arith.mulf %298, %302 : vector<8x32xf32>
    %c112 = arith.constant 112 : index
    %c0_82 = arith.constant 0 : index
    %304 = vector.load %arg9[%c112, %c0_82] : memref<128x128xf32, #tpu.memory_space<vmem>>, vector<8x128xf32>
    %cst_83 = arith.constant dense<0.000000e+00> : vector<8x128xf32>
    %305 = tpu.matmul %303, %7, %cst_83 {dimension_numbers = #tpu.dot_dimension_numbers<[1], [0], [0], [1], [0, 0, 1, 1], [], []>} : vector<8x32xf32>, vector<32x128xf32>, vector<8x128xf32> -> vector<8x128xf32>
    %306 = arith.addf %304, %305 : vector<8x128xf32>
    %307 = arith.negf %306 : vector<8x128xf32>
    %308 = math.exp %307 : vector<8x128xf32>
    %cst_84 = arith.constant 1.000000e+00 : f32
    %309 = vector.broadcast %cst_84 : f32 to vector<8x128xf32>
    %310 = arith.addf %309, %308 : vector<8x128xf32>
    %311 = arith.divf %309, %310 : vector<8x128xf32>
    %312 = vector.extract_strided_slice %311 {offsets = [0, 0], sizes = [8, 32], strides = [1, 1]} : vector<8x128xf32> to vector<8x32xf32>
    %313 = vector.extract_strided_slice %311 {offsets = [0, 32], sizes = [8, 32], strides = [1, 1]} : vector<8x128xf32> to vector<8x32xf32>
    %314 = vector.extract_strided_slice %311 {offsets = [0, 64], sizes = [8, 32], strides = [1, 1]} : vector<8x128xf32> to vector<8x32xf32>
    %cst_85 = arith.constant 2.000000e+00 : f32
    %315 = vector.broadcast %cst_85 : f32 to vector<8x32xf32>
    %316 = arith.mulf %315, %314 : vector<8x32xf32>
    %cst_86 = arith.constant 1.000000e+00 : f32
    %317 = vector.broadcast %cst_86 : f32 to vector<8x32xf32>
    %318 = arith.subf %316, %317 : vector<8x32xf32>
    %319 = vector.extract_strided_slice %311 {offsets = [0, 96], sizes = [8, 32], strides = [1, 1]} : vector<8x128xf32> to vector<8x32xf32>
    %320 = arith.mulf %313, %301 : vector<8x32xf32>
    %321 = arith.mulf %312, %318 : vector<8x32xf32>
    %322 = arith.addf %320, %321 : vector<8x32xf32>
    %323 = math.tanh %322 : vector<8x32xf32>
    %324 = arith.mulf %319, %323 : vector<8x32xf32>
    %c120 = arith.constant 120 : index
    %c0_87 = arith.constant 0 : index
    %325 = vector.load %arg9[%c120, %c0_87] : memref<128x128xf32, #tpu.memory_space<vmem>>, vector<8x128xf32>
    %cst_88 = arith.constant dense<0.000000e+00> : vector<8x128xf32>
    %326 = tpu.matmul %324, %7, %cst_88 {dimension_numbers = #tpu.dot_dimension_numbers<[1], [0], [0], [1], [0, 0, 1, 1], [], []>} : vector<8x32xf32>, vector<32x128xf32>, vector<8x128xf32> -> vector<8x128xf32>
    %327 = arith.addf %325, %326 : vector<8x128xf32>
    %328 = arith.negf %327 : vector<8x128xf32>
    %329 = math.exp %328 : vector<8x128xf32>
    %cst_89 = arith.constant 1.000000e+00 : f32
    %330 = vector.broadcast %cst_89 : f32 to vector<8x128xf32>
    %331 = arith.addf %330, %329 : vector<8x128xf32>
    %332 = arith.divf %330, %331 : vector<8x128xf32>
    %333 = vector.extract_strided_slice %332 {offsets = [0, 0], sizes = [8, 32], strides = [1, 1]} : vector<8x128xf32> to vector<8x32xf32>
    %334 = vector.extract_strided_slice %332 {offsets = [0, 32], sizes = [8, 32], strides = [1, 1]} : vector<8x128xf32> to vector<8x32xf32>
    %335 = vector.extract_strided_slice %332 {offsets = [0, 64], sizes = [8, 32], strides = [1, 1]} : vector<8x128xf32> to vector<8x32xf32>
    %cst_90 = arith.constant 2.000000e+00 : f32
    %336 = vector.broadcast %cst_90 : f32 to vector<8x32xf32>
    %337 = arith.mulf %336, %335 : vector<8x32xf32>
    %cst_91 = arith.constant 1.000000e+00 : f32
    %338 = vector.broadcast %cst_91 : f32 to vector<8x32xf32>
    %339 = arith.subf %337, %338 : vector<8x32xf32>
    %340 = vector.extract_strided_slice %332 {offsets = [0, 96], sizes = [8, 32], strides = [1, 1]} : vector<8x128xf32> to vector<8x32xf32>
    %341 = arith.mulf %334, %322 : vector<8x32xf32>
    %342 = arith.mulf %333, %339 : vector<8x32xf32>
    %343 = arith.addf %341, %342 : vector<8x32xf32>
    %344 = math.tanh %343 : vector<8x32xf32>
    %345 = arith.mulf %340, %344 : vector<8x32xf32>
    %cst_92 = arith.constant dense<0.000000e+00> : vector<8xf32>
    %346 = vector.multi_reduction <add>, %345, %cst_92 [1] : vector<8x32xf32> to vector<8xf32>
    %347 = vector.shape_cast %346 : vector<8xf32> to vector<8x1xf32>
    %cst_93 = arith.constant 3.200000e+01 : f32
    %348 = vector.broadcast %cst_93 : f32 to vector<8x1xf32>
    %349 = arith.divf %347, %348 : vector<8x1xf32>
    %350 = vector.broadcast %349 : vector<8x1xf32> to vector<8x32xf32>
    %351 = arith.subf %345, %350 : vector<8x32xf32>
    %352 = arith.mulf %351, %351 : vector<8x32xf32>
    %cst_94 = arith.constant dense<0.000000e+00> : vector<8xf32>
    %353 = vector.multi_reduction <add>, %352, %cst_94 [1] : vector<8x32xf32> to vector<8xf32>
    %354 = vector.shape_cast %353 : vector<8xf32> to vector<8x1xf32>
    %cst_95 = arith.constant 3.200000e+01 : f32
    %355 = vector.broadcast %cst_95 : f32 to vector<8x1xf32>
    %356 = arith.divf %354, %355 : vector<8x1xf32>
    %357 = vector.broadcast %349 : vector<8x1xf32> to vector<8x32xf32>
    %358 = arith.subf %345, %357 : vector<8x32xf32>
    %cst_96 = arith.constant 9.99999974E-6 : f32
    %359 = vector.broadcast %cst_96 : f32 to vector<8x1xf32>
    %360 = arith.addf %356, %359 : vector<8x1xf32>
    %361 = math.rsqrt %360 : vector<8x1xf32>
    %362 = vector.broadcast %361 : vector<8x1xf32> to vector<8x32xf32>
    %363 = arith.mulf %358, %362 : vector<8x32xf32>
    %c0_97 = arith.constant 0 : index
    %c0_98 = arith.constant 0 : index
    %364 = vector.load %arg4[%c0_97, %c0_98] : memref<1x32xf32, #tpu.memory_space<vmem>>, vector<1x32xf32>
    %365 = vector.broadcast %364 : vector<1x32xf32> to vector<8x32xf32>
    %366 = arith.mulf %363, %365 : vector<8x32xf32>
    %c0_99 = arith.constant 0 : index
    %c0_100 = arith.constant 0 : index
    %367 = vector.load %arg5[%c0_99, %c0_100] : memref<1x32xf32, #tpu.memory_space<vmem>>, vector<1x32xf32>
    %368 = vector.broadcast %367 : vector<1x32xf32> to vector<8x32xf32>
    %369 = arith.addf %366, %368 : vector<8x32xf32>
    %cst_101 = arith.constant 0.000000e+00 : f32
    %370 = vector.broadcast %cst_101 : f32 to vector<8x32xf32>
    %371 = arith.maximumf %369, %370 : vector<8x32xf32>
    %c0_102 = arith.constant 0 : index
    %c0_103 = arith.constant 0 : index
    %372 = vector.load %arg6[%c0_102, %c0_103] : memref<32x8xf32, #tpu.memory_space<vmem>>, vector<32x8xf32>
    %cst_104 = arith.constant dense<0.000000e+00> : vector<8x8xf32>
    %373 = tpu.matmul %371, %372, %cst_104 {dimension_numbers = #tpu.dot_dimension_numbers<[1], [0], [0], [1], [0, 0, 1, 1], [], []>} : vector<8x32xf32>, vector<32x8xf32>, vector<8x8xf32> -> vector<8x8xf32>
    %c0_105 = arith.constant 0 : index
    %c0_106 = arith.constant 0 : index
    %374 = vector.load %arg7[%c0_105, %c0_106] : memref<1x8xf32, #tpu.memory_space<vmem>>, vector<1x8xf32>
    %375 = vector.broadcast %374 : vector<1x8xf32> to vector<8x8xf32>
    %376 = arith.addf %373, %375 : vector<8x8xf32>
    %c0_107 = arith.constant 0 : index
    %c0_108 = arith.constant 0 : index
    %377 = vector.load %arg8[%c0_107, %c0_108] : memref<8x8xf32, #tpu.memory_space<vmem>>, vector<8x8xf32>
    tpu.vector_store %arg8[%c0_107, %c0_108], %376 {strides = array<i32>} : memref<8x8xf32, #tpu.memory_space<vmem>>, vector<8x8xf32>,
    return
  }
}

</mosaic_0001>

<llo_original>
// kernel: lstm_forward.1
$region0: #{lstm_forward.1}
  #allocation0 [shape = 'u32[]', space=smem, size = 0x4, offset = 0x4, fixed_abs, tag = 'smem constant byte address 0x4 - core index']
  #allocation1 [shape = 'u32[72,128]{1,0:T(1,128)}', space=vmem, size = 0x9000, scoped, tag = 'internal scratch']
  #allocation2 [shape = 'f32[128,128]{1,0:T(8,128)}', space=vmem, size = 0x10000, scoped, tag = 'scratch operand']
  %s0 = inlined_call_operand.vmem [shape: f32[128,8], index: 0, kind: input, shape index: {}]
  %s1 = inlined_call_operand.vmem [shape: f32[8,128], index: 1, kind: input, shape index: {}]
  %s2 = inlined_call_operand.vmem [shape: f32[32,128], index: 2, kind: input, shape index: {}]
  %s3 = inlined_call_operand.vmem [shape: f32[1,128], index: 3, kind: input, shape index: {}]
  %s4 = inlined_call_operand.vmem [shape: f32[1,32], index: 4, kind: input, shape index: {}]
  %s5 = inlined_call_operand.vmem [shape: f32[1,32], index: 5, kind: input, shape index: {}]
  %s6 = inlined_call_operand.vmem [shape: f32[32,8], index: 6, kind: input, shape index: {}]
  %s7 = inlined_call_operand.vmem [shape: f32[1,8], index: 7, kind: input, shape index: {}]
  %s8 = inlined_call_operand.vmem [shape: f32[8,8], index: 8, kind: output, shape index: {}]
  %s9 = sld [smem:[#allocation0]]
  $region42: #{lstm_forward.1} parent=0
    _
  %s11 = ssub.s32 1, %s9
  %s12 = scalar_select 0, %s11, %s9
  // Predicated region
  $region2: #{lstm_forward.1} parent=0 // pred_check
    _
  $region3: #{lstm_forward.1} parent=0 // pred_check_branch
    %14 = sbr.rel (0) target = $region5
  $region4: #{lstm_forward.1} parent=0 // pred_region
    _
  $region5: #{lstm_forward.1} parent=0 // pred_fallthru
    _
  // Predicated region
  $region6: #{lstm_forward.1} parent=0 // pred_check
    _
  $region7: #{lstm_forward.1} parent=0 // pred_check_branch
    %16 = sbr.rel (0) target = $region9
  $region8: #{lstm_forward.1} parent=0 // pred_region
    _
  $region9: #{lstm_forward.1} parent=0 // pred_fallthru
    _
  // Predicated region
  $region10: #{lstm_forward.1} parent=0 // pred_check
    _
  $region11: #{lstm_forward.1} parent=0 // pred_check_branch
    %18 = sbr.rel (0) target = $region13
  $region12: #{lstm_forward.1} parent=0 // pred_region
    _
  $region13: #{lstm_forward.1} parent=0 // pred_fallthru
    _
  // Predicated region
  $region14: #{lstm_forward.1} parent=0 // pred_check
    _
  $region15: #{lstm_forward.1} parent=0 // pred_check_branch
    %20 = sbr.rel (0) target = $region17
  $region16: #{lstm_forward.1} parent=0 // pred_region
    _
  $region17: #{lstm_forward.1} parent=0 // pred_fallthru
    _
  // Predicated region
  $region18: #{lstm_forward.1} parent=0 // pred_check
    _
  $region19: #{lstm_forward.1} parent=0 // pred_check_branch
    %22 = sbr.rel (0) target = $region21
  $region20: #{lstm_forward.1} parent=0 // pred_region
    _
  $region21: #{lstm_forward.1} parent=0 // pred_fallthru
    _
  // Predicated region
  $region22: #{lstm_forward.1} parent=0 // pred_check
    _
  $region23: #{lstm_forward.1} parent=0 // pred_check_branch
    %24 = sbr.rel (0) target = $region25
  $region24: #{lstm_forward.1} parent=0 // pred_region
    _
  $region25: #{lstm_forward.1} parent=0 // pred_fallthru
    _
  // Predicated region
  $region26: #{lstm_forward.1} parent=0 // pred_check
    _
  $region27: #{lstm_forward.1} parent=0 // pred_check_branch
    %26 = sbr.rel (0) target = $region29
  $region28: #{lstm_forward.1} parent=0 // pred_region
    _
  $region29: #{lstm_forward.1} parent=0 // pred_fallthru
    _
  // Predicated region
  $region30: #{lstm_forward.1} parent=0 // pred_check
    _
  $region31: #{lstm_forward.1} parent=0 // pred_check_branch
    %28 = sbr.rel (0) target = $region33
  $region32: #{lstm_forward.1} parent=0 // pred_region
    _
  $region33: #{lstm_forward.1} parent=0 // pred_fallthru
    _
  %v29 = vld [vmem:[%s0] sm:$0xff]
  %v30 = vld [vmem:[%s0 + $0x8] sm:$0xff]
  %v31 = vld [vmem:[%s0 + $0x10] sm:$0xff]
  %v32 = vld [vmem:[%s0 + $0x18] sm:$0xff]
  %v33 = vld [vmem:[%s0 + $0x20] sm:$0xff]
  %v34 = vld [vmem:[%s0 + $0x28] sm:$0xff]
  %v35 = vld [vmem:[%s0 + $0x30] sm:$0xff]
  %v36 = vld [vmem:[%s0 + $0x38] sm:$0xff]
  %v37 = vld [vmem:[%s0 + $0x40] sm:$0xff]
  %v38 = vld [vmem:[%s0 + $0x48] sm:$0xff]
  %v39 = vld [vmem:[%s0 + $0x50] sm:$0xff]
  %v40 = vld [vmem:[%s0 + $0x58] sm:$0xff]
  %v41 = vld [vmem:[%s0 + $0x60] sm:$0xff]
  %v42 = vld [vmem:[%s0 + $0x68] sm:$0xff]
  %v43 = vld [vmem:[%s0 + $0x70] sm:$0xff]
  %v44 = vld [vmem:[%s0 + $0x78] sm:$0xff]
  %v45 = vld [vmem:[%s1] sm:$0xff]
  %v46 = vld [vmem:[%s3] sm:$0x1]
  %v48 = vperm.slane %v46, 0
  %vm50 = vcmask 64512
  %v52 = vsel %vm50, %v29, 0
  %v55 = vsel %vm50, %v30, 0
  %v58 = vsel %vm50, %v31, 0
  %v61 = vsel %vm50, %v32, 0
  %v64 = vsel %vm50, %v33, 0
  %v67 = vsel %vm50, %v34, 0
  %v70 = vsel %vm50, %v35, 0
  %v73 = vsel %vm50, %v36, 0
  %v76 = vsel %vm50, %v37, 0
  %v79 = vsel %vm50, %v38, 0
  %v82 = vsel %vm50, %v39, 0
  %v85 = vsel %vm50, %v40, 0
  %v88 = vsel %vm50, %v41, 0
  %v91 = vsel %vm50, %v42, 0
  %v94 = vsel %vm50, %v43, 0
  %v97 = vsel %vm50, %v44, 0
  %99 = vmatpush.msra.mxu0 0.0
  %100 = vmatpush.msra.mxu0 0.0
  %101 = vmatpush.msra.mxu0 0.0
  %102 = vmatpush.msra.mxu0 0.0
  %103 = vmatpush.msra.mxu0 0.0
  %104 = vmatpush.msra.mxu0 0.0
  %105 = vmatpush.msra.mxu0 0.0
  %106 = vmatpush.msra.mxu0 0.0
  %107 = vmatpush.msra.mxu0 0.0
  %108 = vmatpush.msra.mxu0 0.0
  %109 = vmatpush.msra.mxu0 0.0
  %110 = vmatpush.msra.mxu0 0.0
  %111 = vmatpush.msra.mxu0 0.0
  %112 = vmatpush.msra.mxu0 0.0
  %113 = vmatpush.msra.mxu0 0.0
  %114 = vmatpush.msra.mxu0 %v45
  %115 = vmatmul.f32.gmra.mxu0 %v52
  %v116 = vpop.f32.mrf.mxu0
  %v117 = vadd.f32 %v48, %v116
  %118 = vmatmul.f32.gmra.mxu0 %v55
  %v119 = vpop.f32.mrf.mxu0
  %v120 = vadd.f32 %v48, %v119
  %121 = vmatmul.f32.gmra.mxu0 %v58
  %v122 = vpop.f32.mrf.mxu0
  %v123 = vadd.f32 %v48, %v122
  %124 = vmatmul.f32.gmra.mxu0 %v61
  %v125 = vpop.f32.mrf.mxu0
  %v126 = vadd.f32 %v48, %v125
  %127 = vmatmul.f32.gmra.mxu0 %v64
  %v128 = vpop.f32.mrf.mxu0
  %v129 = vadd.f32 %v48, %v128
  %130 = vmatmul.f32.gmra.mxu0 %v67
  %v131 = vpop.f32.mrf.mxu0
  %v132 = vadd.f32 %v48, %v131
  %133 = vmatmul.f32.gmra.mxu0 %v70
  %v134 = vpop.f32.mrf.mxu0
  %v135 = vadd.f32 %v48, %v134
  %136 = vmatmul.f32.gmra.mxu0 %v73
  %v137 = vpop.f32.mrf.mxu0
  %v138 = vadd.f32 %v48, %v137
  %139 = vmatmul.f32.gmra.mxu0 %v76
  %v140 = vpop.f32.mrf.mxu0
  %v141 = vadd.f32 %v48, %v140
  %142 = vmatmul.f32.gmra.mxu0 %v79
  %v143 = vpop.f32.mrf.mxu0
  %v144 = vadd.f32 %v48, %v143
  %145 = vmatmul.f32.gmra.mxu0 %v82
  %v146 = vpop.f32.mrf.mxu0
  %v147 = vadd.f32 %v48, %v146
  %148 = vmatmul.f32.gmra.mxu0 %v85
  %v149 = vpop.f32.mrf.mxu0
  %v150 = vadd.f32 %v48, %v149
  %151 = vmatmul.f32.gmra.mxu0 %v88
  %v152 = vpop.f32.mrf.mxu0
  %v153 = vadd.f32 %v48, %v152
  %154 = vmatmul.f32.gmra.mxu0 %v91
  %v155 = vpop.f32.mrf.mxu0
  %v156 = vadd.f32 %v48, %v155
  %157 = vmatmul.f32.gmra.mxu0 %v94
  %v158 = vpop.f32.mrf.mxu0
  %v159 = vadd.f32 %v48, %v158
  %160 = vmatmul.f32.gmra.mxu0 %v97
  %v161 = vpop.f32.mrf.mxu0
  %v162 = vadd.f32 %v48, %v161
  %163 = vdwg.mxu0
  %164 = vst [vmem:[#allocation2] sm:$0xff] %v117
  %165 = vst [vmem:[#allocation2 + $0x8] sm:$0xff] %v120
  %166 = vst [vmem:[#allocation2 + $0x10] sm:$0xff] %v123
  %167 = vst [vmem:[#allocation2 + $0x18] sm:$0xff] %v126
  %168 = vst [vmem:[#allocation2 + $0x20] sm:$0xff] %v129
  %169 = vst [vmem:[#allocation2 + $0x28] sm:$0xff] %v132
  %170 = vst [vmem:[#allocation2 + $0x30] sm:$0xff] %v135
  %171 = vst [vmem:[#allocation2 + $0x38] sm:$0xff] %v138
  %172 = vst [vmem:[#allocation2 + $0x40] sm:$0xff] %v141
  %173 = vst [vmem:[#allocation2 + $0x48] sm:$0xff] %v144
  %174 = vst [vmem:[#allocation2 + $0x50] sm:$0xff] %v147
  %175 = vst [vmem:[#allocation2 + $0x58] sm:$0xff] %v150
  %176 = vst [vmem:[#allocation2 + $0x60] sm:$0xff] %v153
  %177 = vst [vmem:[#allocation2 + $0x68] sm:$0xff] %v156
  %178 = vst [vmem:[#allocation2 + $0x70] sm:$0xff] %v159
  %179 = vst [vmem:[#allocation2 + $0x78] sm:$0xff] %v162
  %v180 = vld [vmem:[%s2] sm:$0xff]
  %v181 = vld [vmem:[%s2 + $0x8] sm:$0xff]
  %v182 = vld [vmem:[%s2 + $0x10] sm:$0xff]
  %v183 = vld [vmem:[%s2 + $0x18] sm:$0xff]
  %v184 = vld [vmem:[#allocation2] sm:$0xff]
  %vm185 = vcmask 261120
  %v187 = vsel %vm185, 0.0, 0
  %189 = vmatpush.msra.mxu0 0.0
  %190 = vmatpush.msra.mxu0 0.0
  %191 = vmatpush.msra.mxu0 0.0
  %192 = vmatpush.msra.mxu0 0.0
  %193 = vmatpush.msra.mxu0 0.0
  %194 = vmatpush.msra.mxu0 0.0
  %195 = vmatpush.msra.mxu0 0.0
  %196 = vmatpush.msra.mxu0 0.0
  %197 = vmatpush.msra.mxu0 0.0
  %198 = vmatpush.msra.mxu0 0.0
  %199 = vmatpush.msra.mxu0 0.0
  %200 = vmatpush.msra.mxu0 0.0
  %201 = vmatpush.msra.mxu0 %v183
  %202 = vmatpush.msra.mxu0 %v182
  %203 = vmatpush.msra.mxu0 %v181
  %204 = vmatpush.msra.mxu0 %v180
  %205 = vmatmul.f32.gmra.mxu0 %v187
  %v206 = vpop.f32.mrf.mxu0
  %v207 = vadd.f32 0.0, %v206
  %208 = vdwg.mxu0
  %v209 = vadd.f32 %v184, %v207
  %v210 = vxor.u32 %v209, 2147483648
  %v211 = vmul.f32 %v210, 1.442695
  %v212 = vpow.pop %v211
  %v213 = vadd.f32 %v212, 1.0
  %v214 = vrcp.pop %v213
  %v215 = vmul.f32 %v213, %v214
  %v216 = vsub.f32 1.0, %v215
  %v217 = vmul.f32 %v214, %v216
  %v218 = vadd.f32 %v214, %v217
  %vm219 = vweird.f32 %v213
  %vm220 = vweird.f32 %v214
  %vm221 = vmor %vm219, %vm220
  %v222 = vsel %vm221, %v214, %v218
  %v223 = vand.u32 2147483647, %v213
  %vm224 = vcmp.eq.f32.partialorder %v223, 8.507059e+37
  %v225 = vand.u32 %v213, 2147483648
  %v226 = vor.u32 1.1754944e-38, %v225
  %v227 = vsel %vm224, %v226, %v222
  %v228 = vmul.f32 1.0, %v227
  %v229 = vmul.f32 %v228, 2.0
  %v230 = vsub.f32 %v229, 1.0
  %v231 = vmul.f32 %v228, 0.0
  %233 = vrot.lane.b32.xlu0 %v230, 64
  %v234 = vpop.permute.xlu0 %233
  %v236 = vmul.f32 %v228, %v234
  %238 = vrot.lane.b32.xlu0 %v236, 32
  %v239 = vpop.permute.xlu0 %238
  %v241 = vadd.f32 %v231, %v239
  %v242 = vtanh.pop %v241
  %244 = vrot.lane.b32.xlu0 %v242, 64
  %v245 = vpop.permute.xlu0 %244
  %v247 = vmul.f32 %v228, %v245
  %v248 = vld [vmem:[#allocation2 + $0x8] sm:$0xff]
  %250 = vrot.lane.b32.xlu0 %v247, 32
  %v251 = vpop.permute.xlu0 %250
  %v252 = vsel %vm185, %v251, 0
  %254 = vmatpush.msra.mxu0 0.0
  %255 = vmatpush.msra.mxu0 0.0
  %256 = vmatpush.msra.mxu0 0.0
  %257 = vmatpush.msra.mxu0 0.0
  %258 = vmatpush.msra.mxu0 0.0
  %259 = vmatpush.msra.mxu0 0.0
  %260 = vmatpush.msra.mxu0 0.0
  %261 = vmatpush.msra.mxu0 0.0
  %262 = vmatpush.msra.mxu0 0.0
  %263 = vmatpush.msra.mxu0 0.0
  %264 = vmatpush.msra.mxu0 0.0
  %265 = vmatpush.msra.mxu0 0.0
  %266 = vmatpush.msra.mxu0 %v183
  %267 = vmatpush.msra.mxu0 %v182
  %268 = vmatpush.msra.mxu0 %v181
  %269 = vmatpush.msra.mxu0 %v180
  %270 = vmatmul.f32.gmra.mxu0 %v252
  %v271 = vpop.f32.mrf.mxu0
  %v272 = vadd.f32 0.0, %v271
  %273 = vdwg.mxu0
  %v274 = vadd.f32 %v248, %v272
  %v275 = vxor.u32 %v274, 2147483648
  %v276 = vmul.f32 %v275, 1.442695
  %v277 = vpow.pop %v276
  %v278 = vadd.f32 %v277, 1.0
  %v279 = vrcp.pop %v278
  %v280 = vmul.f32 %v278, %v279
  %v281 = vsub.f32 1.0, %v280
  %v282 = vmul.f32 %v279, %v281
  %v283 = vadd.f32 %v279, %v282
  %vm284 = vweird.f32 %v278
  %vm285 = vweird.f32 %v279
  %vm286 = vmor %vm284, %vm285
  %v287 = vsel %vm286, %v279, %v283
  %v288 = vand.u32 2147483647, %v278
  %vm289 = vcmp.eq.f32.partialorder %v288, 8.507059e+37
  %v290 = vand.u32 %v278, 2147483648
  %v291 = vor.u32 1.1754944e-38, %v290
  %v292 = vsel %vm289, %v291, %v287
  %v293 = vmul.f32 1.0, %v292
  %v294 = vmul.f32 %v293, 2.0
  %v295 = vsub.f32 %v294, 1.0
  %v296 = vmul.f32 %v293, %v241
  %298 = vrot.lane.b32.xlu0 %v295, 64
  %v299 = vpop.permute.xlu0 %298
  %v301 = vmul.f32 %v293, %v299
  %303 = vrot.lane.b32.xlu0 %v301, 32
  %v304 = vpop.permute.xlu0 %303
  %v306 = vadd.f32 %v296, %v304
  %v307 = vtanh.pop %v306
  %309 = vrot.lane.b32.xlu0 %v307, 64
  %v310 = vpop.permute.xlu0 %309
  %v312 = vmul.f32 %v293, %v310
  %v313 = vld [vmem:[#allocation2 + $0x10] sm:$0xff]
  %315 = vrot.lane.b32.xlu0 %v312, 32
  %v316 = vpop.permute.xlu0 %315
  %v317 = vsel %vm185, %v316, 0
  %319 = vmatpush.msra.mxu0 0.0
  %320 = vmatpush.msra.mxu0 0.0
  %321 = vmatpush.msra.mxu0 0.0
  %322 = vmatpush.msra.mxu0 0.0
  %323 = vmatpush.msra.mxu0 0.0
  %324 = vmatpush.msra.mxu0 0.0
  %325 = vmatpush.msra.mxu0 0.0
  %326 = vmatpush.msra.mxu0 0.0
  %327 = vmatpush.msra.mxu0 0.0
  %328 = vmatpush.msra.mxu0 0.0
  %329 = vmatpush.msra.mxu0 0.0
  %330 = vmatpush.msra.mxu0 0.0
  %331 = vmatpush.msra.mxu0 %v183
  %332 = vmatpush.msra.mxu0 %v182
  %333 = vmatpush.msra.mxu0 %v181
  %334 = vmatpush.msra.mxu0 %v180
  %335 = vmatmul.f32.gmra.mxu0 %v317
  %v336 = vpop.f32.mrf.mxu0
  %v337 = vadd.f32 0.0, %v336
  %338 = vdwg.mxu0
  %v339 = vadd.f32 %v313, %v337
  %v340 = vxor.u32 %v339, 2147483648
  %v341 = vmul.f32 %v340, 1.442695
  %v342 = vpow.pop %v341
  %v343 = vadd.f32 %v342, 1.0
  %v344 = vrcp.pop %v343
  %v345 = vmul.f32 %v343, %v344
  %v346 = vsub.f32 1.0, %v345
  %v347 = vmul.f32 %v344, %v346
  %v348 = vadd.f32 %v344, %v347
  %vm349 = vweird.f32 %v343
  %vm350 = vweird.f32 %v344
  %vm351 = vmor %vm349, %vm350
  %v352 = vsel %vm351, %v344, %v348
  %v353 = vand.u32 2147483647, %v343
  %vm354 = vcmp.eq.f32.partialorder %v353, 8.507059e+37
  %v355 = vand.u32 %v343, 2147483648
  %v356 = vor.u32 1.1754944e-38, %v355
  %v357 = vsel %vm354, %v356, %v352
  %v358 = vmul.f32 1.0, %v357
  %v359 = vmul.f32 %v358, 2.0
  %v360 = vsub.f32 %v359, 1.0
  %v361 = vmul.f32 %v358, %v306
  %363 = vrot.lane.b32.xlu0 %v360, 64
  %v364 = vpop.permute.xlu0 %363
  %v366 = vmul.f32 %v358, %v364
  %368 = vrot.lane.b32.xlu0 %v366, 32
  %v369 = vpop.permute.xlu0 %368
  %v371 = vadd.f32 %v361, %v369
  %v372 = vtanh.pop %v371
  %374 = vrot.lane.b32.xlu0 %v372, 64
  %v375 = vpop.permute.xlu0 %374
  %v377 = vmul.f32 %v358, %v375
  %v378 = vld [vmem:[#allocation2 + $0x18] sm:$0xff]
  %380 = vrot.lane.b32.xlu0 %v377, 32
  %v381 = vpop.permute.xlu0 %380
  %v382 = vsel %vm185, %v381, 0
  %384 = vmatpush.msra.mxu0 0.0
  %385 = vmatpush.msra.mxu0 0.0
  %386 = vmatpush.msra.mxu0 0.0
  %387 = vmatpush.msra.mxu0 0.0
  %388 = vmatpush.msra.mxu0 0.0
  %389 = vmatpush.msra.mxu0 0.0
  %390 = vmatpush.msra.mxu0 0.0
  %391 = vmatpush.msra.mxu0 0.0
  %392 = vmatpush.msra.mxu0 0.0
  %393 = vmatpush.msra.mxu0 0.0
  %394 = vmatpush.msra.mxu0 0.0
  %395 = vmatpush.msra.mxu0 0.0
  %396 = vmatpush.msra.mxu0 %v183
  %397 = vmatpush.msra.mxu0 %v182
  %398 = vmatpush.msra.mxu0 %v181
  %399 = vmatpush.msra.mxu0 %v180
  %400 = vmatmul.f32.gmra.mxu0 %v382
  %v401 = vpop.f32.mrf.mxu0
  %v402 = vadd.f32 0.0, %v401
  %403 = vdwg.mxu0
  %v404 = vadd.f32 %v378, %v402
  %v405 = vxor.u32 %v404, 2147483648
  %v406 = vmul.f32 %v405, 1.442695
  %v407 = vpow.pop %v406
  %v408 = vadd.f32 %v407, 1.0
  %v409 = vrcp.pop %v408
  %v410 = vmul.f32 %v408, %v409
  %v411 = vsub.f32 1.0, %v410
  %v412 = vmul.f32 %v409, %v411
  %v413 = vadd.f32 %v409, %v412
  %vm414 = vweird.f32 %v408
  %vm415 = vweird.f32 %v409
  %vm416 = vmor %vm414, %vm415
  %v417 = vsel %vm416, %v409, %v413
  %v418 = vand.u32 2147483647, %v408
  %vm419 = vcmp.eq.f32.partialorder %v418, 8.507059e+37
  %v420 = vand.u32 %v408, 2147483648
  %v421 = vor.u32 1.1754944e-38, %v420
  %v422 = vsel %vm419, %v421, %v417
  %v423 = vmul.f32 1.0, %v422
  %v424 = vmul.f32 %v423, 2.0
  %v425 = vsub.f32 %v424, 1.0
  %v426 = vmul.f32 %v423, %v371
  %428 = vrot.lane.b32.xlu0 %v425, 64
  %v429 = vpop.permute.xlu0 %428
  %v431 = vmul.f32 %v423, %v429
  %433 = vrot.lane.b32.xlu0 %v431, 32
  %v434 = vpop.permute.xlu0 %433
  %v436 = vadd.f32 %v426, %v434
  %v437 = vtanh.pop %v436
  %439 = vrot.lane.b32.xlu0 %v437, 64
  %v440 = vpop.permute.xlu0 %439
  %v442 = vmul.f32 %v423, %v440
  %v443 = vld [vmem:[#allocation2 + $0x20] sm:$0xff]
  %445 = vrot.lane.b32.xlu0 %v442, 32
  %v446 = vpop.permute.xlu0 %445
  %v447 = vsel %vm185, %v446, 0
  %449 = vmatpush.msra.mxu0 0.0
  %450 = vmatpush.msra.mxu0 0.0
  %451 = vmatpush.msra.mxu0 0.0
  %452 = vmatpush.msra.mxu0 0.0
  %453 = vmatpush.msra.mxu0 0.0
  %454 = vmatpush.msra.mxu0 0.0
  %455 = vmatpush.msra.mxu0 0.0
  %456 = vmatpush.msra.mxu0 0.0
  %457 = vmatpush.msra.mxu0 0.0
  %458 = vmatpush.msra.mxu0 0.0
  %459 = vmatpush.msra.mxu0 0.0
  %460 = vmatpush.msra.mxu0 0.0
  %461 = vmatpush.msra.mxu0 %v183
  %462 = vmatpush.msra.mxu0 %v182
  %463 = vmatpush.msra.mxu0 %v181
  %464 = vmatpush.msra.mxu0 %v180
  %465 = vmatmul.f32.gmra.mxu0 %v447
  %v466 = vpop.f32.mrf.mxu0
  %v467 = vadd.f32 0.0, %v466
  %468 = vdwg.mxu0
  %v469 = vadd.f32 %v443, %v467
  %v470 = vxor.u32 %v469, 2147483648
  %v471 = vmul.f32 %v470, 1.442695
  %v472 = vpow.pop %v471
  %v473 = vadd.f32 %v472, 1.0
  %v474 = vrcp.pop %v473
  %v475 = vmul.f32 %v473, %v474
  %v476 = vsub.f32 1.0, %v475
  %v477 = vmul.f32 %v474, %v476
  %v478 = vadd.f32 %v474, %v477
  %vm479 = vweird.f32 %v473
  %vm480 = vweird.f32 %v474
  %vm481 = vmor %vm479, %vm480
  %v482 = vsel %vm481, %v474, %v478
  %v483 = vand.u32 2147483647, %v473
  %vm484 = vcmp.eq.f32.partialorder %v483, 8.507059e+37
  %v485 = vand.u32 %v473, 2147483648
  %v486 = vor.u32 1.1754944e-38, %v485
  %v487 = vsel %vm484, %v486, %v482
  %v488 = vmul.f32 1.0, %v487
  %v489 = vmul.f32 %v488, 2.0
  %v490 = vsub.f32 %v489, 1.0
  %v491 = vmul.f32 %v488, %v436
  %493 = vrot.lane.b32.xlu0 %v490, 64
  %v494 = vpop.permute.xlu0 %493
  %v496 = vmul.f32 %v488, %v494
  %498 = vrot.lane.b32.xlu0 %v496, 32
  %v499 = vpop.permute.xlu0 %498
  %v501 = vadd.f32 %v491, %v499
  %v502 = vtanh.pop %v501
  %504 = vrot.lane.b32.xlu0 %v502, 64
  %v505 = vpop.permute.xlu0 %504
  %v507 = vmul.f32 %v488, %v505
  %v508 = vld [vmem:[#allocation2 + $0x28] sm:$0xff]
  %510 = vrot.lane.b32.xlu0 %v507, 32
  %v511 = vpop.permute.xlu0 %510
  %v512 = vsel %vm185, %v511, 0
  %514 = vmatpush.msra.mxu0 0.0
  %515 = vmatpush.msra.mxu0 0.0
  %516 = vmatpush.msra.mxu0 0.0
  %517 = vmatpush.msra.mxu0 0.0
  %518 = vmatpush.msra.mxu0 0.0
  %519 = vmatpush.msra.mxu0 0.0
  %520 = vmatpush.msra.mxu0 0.0
  %521 = vmatpush.msra.mxu0 0.0
  %522 = vmatpush.msra.mxu0 0.0
  %523 = vmatpush.msra.mxu0 0.0
  %524 = vmatpush.msra.mxu0 0.0
  %525 = vmatpush.msra.mxu0 0.0
  %526 = vmatpush.msra.mxu0 %v183
  %527 = vmatpush.msra.mxu0 %v182
  %528 = vmatpush.msra.mxu0 %v181
  %529 = vmatpush.msra.mxu0 %v180
  %530 = vmatmul.f32.gmra.mxu0 %v512
  %v531 = vpop.f32.mrf.mxu0
  %v532 = vadd.f32 0.0, %v531
  %533 = vdwg.mxu0
  %v534 = vadd.f32 %v508, %v532
  %v535 = vxor.u32 %v534, 2147483648
  %v536 = vmul.f32 %v535, 1.442695
  %v537 = vpow.pop %v536
  %v538 = vadd.f32 %v537, 1.0
  %v539 = vrcp.pop %v538
  %v540 = vmul.f32 %v538, %v539
  %v541 = vsub.f32 1.0, %v540
  %v542 = vmul.f32 %v539, %v541
  %v543 = vadd.f32 %v539, %v542
  %vm544 = vweird.f32 %v538
  %vm545 = vweird.f32 %v539
  %vm546 = vmor %vm544, %vm545
  %v547 = vsel %vm546, %v539, %v543
  %v548 = vand.u32 2147483647, %v538
  %vm549 = vcmp.eq.f32.partialorder %v548, 8.507059e+37
  %v550 = vand.u32 %v538, 2147483648
  %v551 = vor.u32 1.1754944e-38, %v550
  %v552 = vsel %vm549, %v551, %v547
  %v553 = vmul.f32 1.0, %v552
  %v554 = vmul.f32 %v553, 2.0
  %v555 = vsub.f32 %v554, 1.0
  %v556 = vmul.f32 %v553, %v501
  %558 = vrot.lane.b32.xlu0 %v555, 64
  %v559 = vpop.permute.xlu0 %558
  %v561 = vmul.f32 %v553, %v559
  %563 = vrot.lane.b32.xlu0 %v561, 32
  %v564 = vpop.permute.xlu0 %563
  %v566 = vadd.f32 %v556, %v564
  %v567 = vtanh.pop %v566
  %569 = vrot.lane.b32.xlu0 %v567, 64
  %v570 = vpop.permute.xlu0 %569
  %v572 = vmul.f32 %v553, %v570
  %v573 = vld [vmem:[#allocation2 + $0x30] sm:$0xff]
  %575 = vrot.lane.b32.xlu0 %v572, 32
  %v576 = vpop.permute.xlu0 %575
  %v577 = vsel %vm185, %v576, 0
  %579 = vmatpush.msra.mxu0 0.0
  %580 = vmatpush.msra.mxu0 0.0
  %581 = vmatpush.msra.mxu0 0.0
  %582 = vmatpush.msra.mxu0 0.0
  %583 = vmatpush.msra.mxu0 0.0
  %584 = vmatpush.msra.mxu0 0.0
  %585 = vmatpush.msra.mxu0 0.0
  %586 = vmatpush.msra.mxu0 0.0
  %587 = vmatpush.msra.mxu0 0.0
  %588 = vmatpush.msra.mxu0 0.0
  %589 = vmatpush.msra.mxu0 0.0
  %590 = vmatpush.msra.mxu0 0.0
  %591 = vmatpush.msra.mxu0 %v183
  %592 = vmatpush.msra.mxu0 %v182
  %593 = vmatpush.msra.mxu0 %v181
  %594 = vmatpush.msra.mxu0 %v180
  %595 = vmatmul.f32.gmra.mxu0 %v577
  %v596 = vpop.f32.mrf.mxu0
  %v597 = vadd.f32 0.0, %v596
  %598 = vdwg.mxu0
  %v599 = vadd.f32 %v573, %v597
  %v600 = vxor.u32 %v599, 2147483648
  %v601 = vmul.f32 %v600, 1.442695
  %v602 = vpow.pop %v601
  %v603 = vadd.f32 %v602, 1.0
  %v604 = vrcp.pop %v603
  %v605 = vmul.f32 %v603, %v604
  %v606 = vsub.f32 1.0, %v605
  %v607 = vmul.f32 %v604, %v606
  %v608 = vadd.f32 %v604, %v607
  %vm609 = vweird.f32 %v603
  %vm610 = vweird.f32 %v604
  %vm611 = vmor %vm609, %vm610
  %v612 = vsel %vm611, %v604, %v608
  %v613 = vand.u32 2147483647, %v603
  %vm614 = vcmp.eq.f32.partialorder %v613, 8.507059e+37
  %v615 = vand.u32 %v603, 2147483648
  %v616 = vor.u32 1.1754944e-38, %v615
  %v617 = vsel %vm614, %v616, %v612
  %v618 = vmul.f32 1.0, %v617
  %v619 = vmul.f32 %v618, 2.0
  %v620 = vsub.f32 %v619, 1.0
  %v621 = vmul.f32 %v618, %v566
  %623 = vrot.lane.b32.xlu0 %v620, 64
  %v624 = vpop.permute.xlu0 %623
  %v626 = vmul.f32 %v618, %v624
  %628 = vrot.lane.b32.xlu0 %v626, 32
  %v629 = vpop.permute.xlu0 %628
  %v631 = vadd.f32 %v621, %v629
  %v632 = vtanh.pop %v631
  %634 = vrot.lane.b32.xlu0 %v632, 64
  %v635 = vpop.permute.xlu0 %634
  %v637 = vmul.f32 %v618, %v635
  %v638 = vld [vmem:[#allocation2 + $0x38] sm:$0xff]
  %640 = vrot.lane.b32.xlu0 %v637, 32
  %v641 = vpop.permute.xlu0 %640
  %v642 = vsel %vm185, %v641, 0
  %644 = vmatpush.msra.mxu0 0.0
  %645 = vmatpush.msra.mxu0 0.0
  %646 = vmatpush.msra.mxu0 0.0
  %647 = vmatpush.msra.mxu0 0.0
  %648 = vmatpush.msra.mxu0 0.0
  %649 = vmatpush.msra.mxu0 0.0
  %650 = vmatpush.msra.mxu0 0.0
  %651 = vmatpush.msra.mxu0 0.0
  %652 = vmatpush.msra.mxu0 0.0
  %653 = vmatpush.msra.mxu0 0.0
  %654 = vmatpush.msra.mxu0 0.0
  %655 = vmatpush.msra.mxu0 0.0
  %656 = vmatpush.msra.mxu0 %v183
  %657 = vmatpush.msra.mxu0 %v182
  %658 = vmatpush.msra.mxu0 %v181
  %659 = vmatpush.msra.mxu0 %v180
  %660 = vmatmul.f32.gmra.mxu0 %v642
  %v661 = vpop.f32.mrf.mxu0
  %v662 = vadd.f32 0.0, %v661
  %663 = vdwg.mxu0
  %v664 = vadd.f32 %v638, %v662
  %v665 = vxor.u32 %v664, 2147483648
  %v666 = vmul.f32 %v665, 1.442695
  %v667 = vpow.pop %v666
  %v668 = vadd.f32 %v667, 1.0
  %v669 = vrcp.pop %v668
  %v670 = vmul.f32 %v668, %v669
  %v671 = vsub.f32 1.0, %v670
  %v672 = vmul.f32 %v669, %v671
  %v673 = vadd.f32 %v669, %v672
  %vm674 = vweird.f32 %v668
  %vm675 = vweird.f32 %v669
  %vm676 = vmor %vm674, %vm675
  %v677 = vsel %vm676, %v669, %v673
  %v678 = vand.u32 2147483647, %v668
  %vm679 = vcmp.eq.f32.partialorder %v678, 8.507059e+37
  %v680 = vand.u32 %v668, 2147483648
  %v681 = vor.u32 1.1754944e-38, %v680
  %v682 = vsel %vm679, %v681, %v677
  %v683 = vmul.f32 1.0, %v682
  %v684 = vmul.f32 %v683, 2.0
  %v685 = vsub.f32 %v684, 1.0
  %v686 = vmul.f32 %v683, %v631
  %688 = vrot.lane.b32.xlu0 %v685, 64
  %v689 = vpop.permute.xlu0 %688
  %v691 = vmul.f32 %v683, %v689
  %693 = vrot.lane.b32.xlu0 %v691, 32
  %v694 = vpop.permute.xlu0 %693
  %v696 = vadd.f32 %v686, %v694
  %v697 = vtanh.pop %v696
  %699 = vrot.lane.b32.xlu0 %v697, 64
  %v700 = vpop.permute.xlu0 %699
  %v702 = vmul.f32 %v683, %v700
  %v703 = vld [vmem:[#allocation2 + $0x40] sm:$0xff]
  %705 = vrot.lane.b32.xlu0 %v702, 32
  %v706 = vpop.permute.xlu0 %705
  %v707 = vsel %vm185, %v706, 0
  %709 = vmatpush.msra.mxu0 0.0
  %710 = vmatpush.msra.mxu0 0.0
  %711 = vmatpush.msra.mxu0 0.0
  %712 = vmatpush.msra.mxu0 0.0
  %713 = vmatpush.msra.mxu0 0.0
  %714 = vmatpush.msra.mxu0 0.0
  %715 = vmatpush.msra.mxu0 0.0
  %716 = vmatpush.msra.mxu0 0.0
  %717 = vmatpush.msra.mxu0 0.0
  %718 = vmatpush.msra.mxu0 0.0
  %719 = vmatpush.msra.mxu0 0.0
  %720 = vmatpush.msra.mxu0 0.0
  %721 = vmatpush.msra.mxu0 %v183
  %722 = vmatpush.msra.mxu0 %v182
  %723 = vmatpush.msra.mxu0 %v181
  %724 = vmatpush.msra.mxu0 %v180
  %725 = vmatmul.f32.gmra.mxu0 %v707
  %v726 = vpop.f32.mrf.mxu0
  %v727 = vadd.f32 0.0, %v726
  %728 = vdwg.mxu0
  %v729 = vadd.f32 %v703, %v727
  %v730 = vxor.u32 %v729, 2147483648
  %v731 = vmul.f32 %v730, 1.442695
  %v732 = vpow.pop %v731
  %v733 = vadd.f32 %v732, 1.0
  %v734 = vrcp.pop %v733
  %v735 = vmul.f32 %v733, %v734
  %v736 = vsub.f32 1.0, %v735
  %v737 = vmul.f32 %v734, %v736
  %v738 = vadd.f32 %v734, %v737
  %vm739 = vweird.f32 %v733
  %vm740 = vweird.f32 %v734
  %vm741 = vmor %vm739, %vm740
  %v742 = vsel %vm741, %v734, %v738
  %v743 = vand.u32 2147483647, %v733
  %vm744 = vcmp.eq.f32.partialorder %v743, 8.507059e+37
  %v745 = vand.u32 %v733, 2147483648
  %v746 = vor.u32 1.1754944e-38, %v745
  %v747 = vsel %vm744, %v746, %v742
  %v748 = vmul.f32 1.0, %v747
  %v749 = vmul.f32 %v748, 2.0
  %v750 = vsub.f32 %v749, 1.0
  %v751 = vmul.f32 %v748, %v696
  %753 = vrot.lane.b32.xlu0 %v750, 64
  %v754 = vpop.permute.xlu0 %753
  %v756 = vmul.f32 %v748, %v754
  %758 = vrot.lane.b32.xlu0 %v756, 32
  %v759 = vpop.permute.xlu0 %758
  %v761 = vadd.f32 %v751, %v759
  %v762 = vtanh.pop %v761
  %764 = vrot.lane.b32.xlu0 %v762, 64
  %v765 = vpop.permute.xlu0 %764
  %v767 = vmul.f32 %v748, %v765
  %v768 = vld [vmem:[#allocation2 + $0x48] sm:$0xff]
  %770 = vrot.lane.b32.xlu0 %v767, 32
  %v771 = vpop.permute.xlu0 %770
  %v772 = vsel %vm185, %v771, 0
  %774 = vmatpush.msra.mxu0 0.0
  %775 = vmatpush.msra.mxu0 0.0
  %776 = vmatpush.msra.mxu0 0.0
  %777 = vmatpush.msra.mxu0 0.0
  %778 = vmatpush.msra.mxu0 0.0
  %779 = vmatpush.msra.mxu0 0.0
  %780 = vmatpush.msra.mxu0 0.0
  %781 = vmatpush.msra.mxu0 0.0
  %782 = vmatpush.msra.mxu0 0.0
  %783 = vmatpush.msra.mxu0 0.0
  %784 = vmatpush.msra.mxu0 0.0
  %785 = vmatpush.msra.mxu0 0.0
  %786 = vmatpush.msra.mxu0 %v183
  %787 = vmatpush.msra.mxu0 %v182
  %788 = vmatpush.msra.mxu0 %v181
  %789 = vmatpush.msra.mxu0 %v180
  %790 = vmatmul.f32.gmra.mxu0 %v772
  %v791 = vpop.f32.mrf.mxu0
  %v792 = vadd.f32 0.0, %v791
  %793 = vdwg.mxu0
  %v794 = vadd.f32 %v768, %v792
  %v795 = vxor.u32 %v794, 2147483648
  %v796 = vmul.f32 %v795, 1.442695
  %v797 = vpow.pop %v796
  %v798 = vadd.f32 %v797, 1.0
  %v799 = vrcp.pop %v798
  %v800 = vmul.f32 %v798, %v799
  %v801 = vsub.f32 1.0, %v800
  %v802 = vmul.f32 %v799, %v801
  %v803 = vadd.f32 %v799, %v802
  %vm804 = vweird.f32 %v798
  %vm805 = vweird.f32 %v799
  %vm806 = vmor %vm804, %vm805
  %v807 = vsel %vm806, %v799, %v803
  %v808 = vand.u32 2147483647, %v798
  %vm809 = vcmp.eq.f32.partialorder %v808, 8.507059e+37
  %v810 = vand.u32 %v798, 2147483648
  %v811 = vor.u32 1.1754944e-38, %v810
  %v812 = vsel %vm809, %v811, %v807
  %v813 = vmul.f32 1.0, %v812
  %v814 = vmul.f32 %v813, 2.0
  %v815 = vsub.f32 %v814, 1.0
  %v816 = vmul.f32 %v813, %v761
  %818 = vrot.lane.b32.xlu0 %v815, 64
  %v819 = vpop.permute.xlu0 %818
  %v821 = vmul.f32 %v813, %v819
  %823 = vrot.lane.b32.xlu0 %v821, 32
  %v824 = vpop.permute.xlu0 %823
  %v826 = vadd.f32 %v816, %v824
  %v827 = vtanh.pop %v826
  %829 = vrot.lane.b32.xlu0 %v827, 64
  %v830 = vpop.permute.xlu0 %829
  %v832 = vmul.f32 %v813, %v830
  %v833 = vld [vmem:[#allocation2 + $0x50] sm:$0xff]
  %835 = vrot.lane.b32.xlu0 %v832, 32
  %v836 = vpop.permute.xlu0 %835
  %v837 = vsel %vm185, %v836, 0
  %839 = vmatpush.msra.mxu0 0.0
  %840 = vmatpush.msra.mxu0 0.0
  %841 = vmatpush.msra.mxu0 0.0
  %842 = vmatpush.msra.mxu0 0.0
  %843 = vmatpush.msra.mxu0 0.0
  %844 = vmatpush.msra.mxu0 0.0
  %845 = vmatpush.msra.mxu0 0.0
  %846 = vmatpush.msra.mxu0 0.0
  %847 = vmatpush.msra.mxu0 0.0
  %848 = vmatpush.msra.mxu0 0.0
  %849 = vmatpush.msra.mxu0 0.0
  %850 = vmatpush.msra.mxu0 0.0
  %851 = vmatpush.msra.mxu0 %v183
  %852 = vmatpush.msra.mxu0 %v182
  %853 = vmatpush.msra.mxu0 %v181
  %854 = vmatpush.msra.mxu0 %v180
  %855 = vmatmul.f32.gmra.mxu0 %v837
  %v856 = vpop.f32.mrf.mxu0
  %v857 = vadd.f32 0.0, %v856
  %858 = vdwg.mxu0
  %v859 = vadd.f32 %v833, %v857
  %v860 = vxor.u32 %v859, 2147483648
  %v861 = vmul.f32 %v860, 1.442695
  %v862 = vpow.pop %v861
  %v863 = vadd.f32 %v862, 1.0
  %v864 = vrcp.pop %v863
  %v865 = vmul.f32 %v863, %v864
  %v866 = vsub.f32 1.0, %v865
  %v867 = vmul.f32 %v864, %v866
  %v868 = vadd.f32 %v864, %v867
  %vm869 = vweird.f32 %v863
  %vm870 = vweird.f32 %v864
  %vm871 = vmor %vm869, %vm870
  %v872 = vsel %vm871, %v864, %v868
  %v873 = vand.u32 2147483647, %v863
  %vm874 = vcmp.eq.f32.partialorder %v873, 8.507059e+37
  %v875 = vand.u32 %v863, 2147483648
  %v876 = vor.u32 1.1754944e-38, %v875
  %v877 = vsel %vm874, %v876, %v872
  %v878 = vmul.f32 1.0, %v877
  %v879 = vmul.f32 %v878, 2.0
  %v880 = vsub.f32 %v879, 1.0
  %v881 = vmul.f32 %v878, %v826
  %883 = vrot.lane.b32.xlu0 %v880, 64
  %v884 = vpop.permute.xlu0 %883
  %v886 = vmul.f32 %v878, %v884
  %888 = vrot.lane.b32.xlu0 %v886, 32
  %v889 = vpop.permute.xlu0 %888
  %v891 = vadd.f32 %v881, %v889
  %v892 = vtanh.pop %v891
  %894 = vrot.lane.b32.xlu0 %v892, 64
  %v895 = vpop.permute.xlu0 %894
  %v897 = vmul.f32 %v878, %v895
  %v898 = vld [vmem:[#allocation2 + $0x58] sm:$0xff]
  %900 = vrot.lane.b32.xlu0 %v897, 32
  %v901 = vpop.permute.xlu0 %900
  %v902 = vsel %vm185, %v901, 0
  %904 = vmatpush.msra.mxu0 0.0
  %905 = vmatpush.msra.mxu0 0.0
  %906 = vmatpush.msra.mxu0 0.0
  %907 = vmatpush.msra.mxu0 0.0
  %908 = vmatpush.msra.mxu0 0.0
  %909 = vmatpush.msra.mxu0 0.0
  %910 = vmatpush.msra.mxu0 0.0
  %911 = vmatpush.msra.mxu0 0.0
  %912 = vmatpush.msra.mxu0 0.0
  %913 = vmatpush.msra.mxu0 0.0
  %914 = vmatpush.msra.mxu0 0.0
  %915 = vmatpush.msra.mxu0 0.0
  %916 = vmatpush.msra.mxu0 %v183
  %917 = vmatpush.msra.mxu0 %v182
  %918 = vmatpush.msra.mxu0 %v181
  %919 = vmatpush.msra.mxu0 %v180
  %920 = vmatmul.f32.gmra.mxu0 %v902
  %v921 = vpop.f32.mrf.mxu0
  %v922 = vadd.f32 0.0, %v921
  %923 = vdwg.mxu0
  %v924 = vadd.f32 %v898, %v922
  %v925 = vxor.u32 %v924, 2147483648
  %v926 = vmul.f32 %v925, 1.442695
  %v927 = vpow.pop %v926
  %v928 = vadd.f32 %v927, 1.0
  %v929 = vrcp.pop %v928
  %v930 = vmul.f32 %v928, %v929
  %v931 = vsub.f32 1.0, %v930
  %v932 = vmul.f32 %v929, %v931
  %v933 = vadd.f32 %v929, %v932
  %vm934 = vweird.f32 %v928
  %vm935 = vweird.f32 %v929
  %vm936 = vmor %vm934, %vm935
  %v937 = vsel %vm936, %v929, %v933
  %v938 = vand.u32 2147483647, %v928
  %vm939 = vcmp.eq.f32.partialorder %v938, 8.507059e+37
  %v940 = vand.u32 %v928, 2147483648
  %v941 = vor.u32 1.1754944e-38, %v940
  %v942 = vsel %vm939, %v941, %v937
  %v943 = vmul.f32 1.0, %v942
  %v944 = vmul.f32 %v943, 2.0
  %v945 = vsub.f32 %v944, 1.0
  %v946 = vmul.f32 %v943, %v891
  %948 = vrot.lane.b32.xlu0 %v945, 64
  %v949 = vpop.permute.xlu0 %948
  %v951 = vmul.f32 %v943, %v949
  %953 = vrot.lane.b32.xlu0 %v951, 32
  %v954 = vpop.permute.xlu0 %953
  %v956 = vadd.f32 %v946, %v954
  %v957 = vtanh.pop %v956
  %959 = vrot.lane.b32.xlu0 %v957, 64
  %v960 = vpop.permute.xlu0 %959
  %v962 = vmul.f32 %v943, %v960
  %v963 = vld [vmem:[#allocation2 + $0x60] sm:$0xff]
  %965 = vrot.lane.b32.xlu0 %v962, 32
  %v966 = vpop.permute.xlu0 %965
  %v967 = vsel %vm185, %v966, 0
  %969 = vmatpush.msra.mxu0 0.0
  %970 = vmatpush.msra.mxu0 0.0
  %971 = vmatpush.msra.mxu0 0.0
  %972 = vmatpush.msra.mxu0 0.0
  %973 = vmatpush.msra.mxu0 0.0
  %974 = vmatpush.msra.mxu0 0.0
  %975 = vmatpush.msra.mxu0 0.0
  %976 = vmatpush.msra.mxu0 0.0
  %977 = vmatpush.msra.mxu0 0.0
  %978 = vmatpush.msra.mxu0 0.0
  %979 = vmatpush.msra.mxu0 0.0
  %980 = vmatpush.msra.mxu0 0.0
  %981 = vmatpush.msra.mxu0 %v183
  %982 = vmatpush.msra.mxu0 %v182
  %983 = vmatpush.msra.mxu0 %v181
  %984 = vmatpush.msra.mxu0 %v180
  %985 = vmatmul.f32.gmra.mxu0 %v967
  %v986 = vpop.f32.mrf.mxu0
  %v987 = vadd.f32 0.0, %v986
  %988 = vdwg.mxu0
  %v989 = vadd.f32 %v963, %v987
  %v990 = vxor.u32 %v989, 2147483648
  %v991 = vmul.f32 %v990, 1.442695
  %v992 = vpow.pop %v991
  %v993 = vadd.f32 %v992, 1.0
  %v994 = vrcp.pop %v993
  %v995 = vmul.f32 %v993, %v994
  %v996 = vsub.f32 1.0, %v995
  %v997 = vmul.f32 %v994, %v996
  %v998 = vadd.f32 %v994, %v997
  %vm999 = vweird.f32 %v993
  %vm1000 = vweird.f32 %v994
  %vm1001 = vmor %vm999, %vm1000
  %v1002 = vsel %vm1001, %v994, %v998
  %v1003 = vand.u32 2147483647, %v993
  %vm1004 = vcmp.eq.f32.partialorder %v1003, 8.507059e+37
  %v1005 = vand.u32 %v993, 2147483648
  %v1006 = vor.u32 1.1754944e-38, %v1005
  %v1007 = vsel %vm1004, %v1006, %v1002
  %v1008 = vmul.f32 1.0, %v1007
  %v1009 = vmul.f32 %v1008, 2.0
  %v1010 = vsub.f32 %v1009, 1.0
  %v1011 = vmul.f32 %v1008, %v956
  %1013 = vrot.lane.b32.xlu0 %v1010, 64
  %v1014 = vpop.permute.xlu0 %1013
  %v1016 = vmul.f32 %v1008, %v1014
  %1018 = vrot.lane.b32.xlu0 %v1016, 32
  %v1019 = vpop.permute.xlu0 %1018
  %v1021 = vadd.f32 %v1011, %v1019
  %v1022 = vtanh.pop %v1021
  %1024 = vrot.lane.b32.xlu0 %v1022, 64
  %v1025 = vpop.permute.xlu0 %1024
  %v1027 = vmul.f32 %v1008, %v1025
  %v1028 = vld [vmem:[#allocation2 + $0x68] sm:$0xff]
  %1030 = vrot.lane.b32.xlu0 %v1027, 32
  %v1031 = vpop.permute.xlu0 %1030
  %v1032 = vsel %vm185, %v1031, 0
  %1034 = vmatpush.msra.mxu0 0.0
  %1035 = vmatpush.msra.mxu0 0.0
  %1036 = vmatpush.msra.mxu0 0.0
  %1037 = vmatpush.msra.mxu0 0.0
  %1038 = vmatpush.msra.mxu0 0.0
  %1039 = vmatpush.msra.mxu0 0.0
  %1040 = vmatpush.msra.mxu0 0.0
  %1041 = vmatpush.msra.mxu0 0.0
  %1042 = vmatpush.msra.mxu0 0.0
  %1043 = vmatpush.msra.mxu0 0.0
  %1044 = vmatpush.msra.mxu0 0.0
  %1045 = vmatpush.msra.mxu0 0.0
  %1046 = vmatpush.msra.mxu0 %v183
  %1047 = vmatpush.msra.mxu0 %v182
  %1048 = vmatpush.msra.mxu0 %v181
  %1049 = vmatpush.msra.mxu0 %v180
  %1050 = vmatmul.f32.gmra.mxu0 %v1032
  %v1051 = vpop.f32.mrf.mxu0
  %v1052 = vadd.f32 0.0, %v1051
  %1053 = vdwg.mxu0
  %v1054 = vadd.f32 %v1028, %v1052
  %v1055 = vxor.u32 %v1054, 2147483648
  %v1056 = vmul.f32 %v1055, 1.442695
  %v1057 = vpow.pop %v1056
  %v1058 = vadd.f32 %v1057, 1.0
  %v1059 = vrcp.pop %v1058
  %v1060 = vmul.f32 %v1058, %v1059
  %v1061 = vsub.f32 1.0, %v1060
  %v1062 = vmul.f32 %v1059, %v1061
  %v1063 = vadd.f32 %v1059, %v1062
  %vm1064 = vweird.f32 %v1058
  %vm1065 = vweird.f32 %v1059
  %vm1066 = vmor %vm1064, %vm1065
  %v1067 = vsel %vm1066, %v1059, %v1063
  %v1068 = vand.u32 2147483647, %v1058
  %vm1069 = vcmp.eq.f32.partialorder %v1068, 8.507059e+37
  %v1070 = vand.u32 %v1058, 2147483648
  %v1071 = vor.u32 1.1754944e-38, %v1070
  %v1072 = vsel %vm1069, %v1071, %v1067
  %v1073 = vmul.f32 1.0, %v1072
  %v1074 = vmul.f32 %v1073, 2.0
  %v1075 = vsub.f32 %v1074, 1.0
  %v1076 = vmul.f32 %v1073, %v1021
  %1078 = vrot.lane.b32.xlu0 %v1075, 64
  %v1079 = vpop.permute.xlu0 %1078
  %v1081 = vmul.f32 %v1073, %v1079
  %1083 = vrot.lane.b32.xlu0 %v1081, 32
  %v1084 = vpop.permute.xlu0 %1083
  %v1086 = vadd.f32 %v1076, %v1084
  %v1087 = vtanh.pop %v1086
  %1089 = vrot.lane.b32.xlu0 %v1087, 64
  %v1090 = vpop.permute.xlu0 %1089
  %v1092 = vmul.f32 %v1073, %v1090
  %v1093 = vld [vmem:[#allocation2 + $0x70] sm:$0xff]
  %1095 = vrot.lane.b32.xlu0 %v1092, 32
  %v1096 = vpop.permute.xlu0 %1095
  %v1097 = vsel %vm185, %v1096, 0
  %1099 = vmatpush.msra.mxu0 0.0
  %1100 = vmatpush.msra.mxu0 0.0
  %1101 = vmatpush.msra.mxu0 0.0
  %1102 = vmatpush.msra.mxu0 0.0
  %1103 = vmatpush.msra.mxu0 0.0
  %1104 = vmatpush.msra.mxu0 0.0
  %1105 = vmatpush.msra.mxu0 0.0
  %1106 = vmatpush.msra.mxu0 0.0
  %1107 = vmatpush.msra.mxu0 0.0
  %1108 = vmatpush.msra.mxu0 0.0
  %1109 = vmatpush.msra.mxu0 0.0
  %1110 = vmatpush.msra.mxu0 0.0
  %1111 = vmatpush.msra.mxu0 %v183
  %1112 = vmatpush.msra.mxu0 %v182
  %1113 = vmatpush.msra.mxu0 %v181
  %1114 = vmatpush.msra.mxu0 %v180
  %1115 = vmatmul.f32.gmra.mxu0 %v1097
  %v1116 = vpop.f32.mrf.mxu0
  %v1117 = vadd.f32 0.0, %v1116
  %1118 = vdwg.mxu0
  %v1119 = vadd.f32 %v1093, %v1117
  %v1120 = vxor.u32 %v1119, 2147483648
  %v1121 = vmul.f32 %v1120, 1.442695
  %v1122 = vpow.pop %v1121
  %v1123 = vadd.f32 %v1122, 1.0
  %v1124 = vrcp.pop %v1123
  %v1125 = vmul.f32 %v1123, %v1124
  %v1126 = vsub.f32 1.0, %v1125
  %v1127 = vmul.f32 %v1124, %v1126
  %v1128 = vadd.f32 %v1124, %v1127
  %vm1129 = vweird.f32 %v1123
  %vm1130 = vweird.f32 %v1124
  %vm1131 = vmor %vm1129, %vm1130
  %v1132 = vsel %vm1131, %v1124, %v1128
  %v1133 = vand.u32 2147483647, %v1123
  %vm1134 = vcmp.eq.f32.partialorder %v1133, 8.507059e+37
  %v1135 = vand.u32 %v1123, 2147483648
  %v1136 = vor.u32 1.1754944e-38, %v1135
  %v1137 = vsel %vm1134, %v1136, %v1132
  %v1138 = vmul.f32 1.0, %v1137
  %v1139 = vmul.f32 %v1138, 2.0
  %v1140 = vsub.f32 %v1139, 1.0
  %v1141 = vmul.f32 %v1138, %v1086
  %1143 = vrot.lane.b32.xlu0 %v1140, 64
  %v1144 = vpop.permute.xlu0 %1143
  %v1146 = vmul.f32 %v1138, %v1144
  %1148 = vrot.lane.b32.xlu0 %v1146, 32
  %v1149 = vpop.permute.xlu0 %1148
  %v1151 = vadd.f32 %v1141, %v1149
  %v1152 = vtanh.pop %v1151
  %1154 = vrot.lane.b32.xlu0 %v1152, 64
  %v1155 = vpop.permute.xlu0 %1154
  %v1157 = vmul.f32 %v1138, %v1155
  %v1158 = vld [vmem:[#allocation2 + $0x78] sm:$0xff]
  %1160 = vrot.lane.b32.xlu0 %v1157, 32
  %v1161 = vpop.permute.xlu0 %1160
  %v1162 = vsel %vm185, %v1161, 0
  %1164 = vmatpush.msra.mxu0 0.0
  %1165 = vmatpush.msra.mxu0 0.0
  %1166 = vmatpush.msra.mxu0 0.0
  %1167 = vmatpush.msra.mxu0 0.0
  %1168 = vmatpush.msra.mxu0 0.0
  %1169 = vmatpush.msra.mxu0 0.0
  %1170 = vmatpush.msra.mxu0 0.0
  %1171 = vmatpush.msra.mxu0 0.0
  %1172 = vmatpush.msra.mxu0 0.0
  %1173 = vmatpush.msra.mxu0 0.0
  %1174 = vmatpush.msra.mxu0 0.0
  %1175 = vmatpush.msra.mxu0 0.0
  %1176 = vmatpush.msra.mxu0 %v183
  %1177 = vmatpush.msra.mxu0 %v182
  %1178 = vmatpush.msra.mxu0 %v181
  %1179 = vmatpush.msra.mxu0 %v180
  %1180 = vmatmul.f32.gmra.mxu0 %v1162
  %v1181 = vpop.f32.mrf.mxu0
  %v1182 = vadd.f32 0.0, %v1181
  %1183 = vdwg.mxu0
  %v1184 = vadd.f32 %v1158, %v1182
  %v1185 = vxor.u32 %v1184, 2147483648
  %v1186 = vmul.f32 %v1185, 1.442695
  %v1187 = vpow.pop %v1186
  %v1188 = vadd.f32 %v1187, 1.0
  %v1189 = vrcp.pop %v1188
  %v1190 = vmul.f32 %v1188, %v1189
  %v1191 = vsub.f32 1.0, %v1190
  %v1192 = vmul.f32 %v1189, %v1191
  %v1193 = vadd.f32 %v1189, %v1192
  %vm1194 = vweird.f32 %v1188
  %vm1195 = vweird.f32 %v1189
  %vm1196 = vmor %vm1194, %vm1195
  %v1197 = vsel %vm1196, %v1189, %v1193
  %v1198 = vand.u32 2147483647, %v1188
  %vm1199 = vcmp.eq.f32.partialorder %v1198, 8.507059e+37
  %v1200 = vand.u32 %v1188, 2147483648
  %v1201 = vor.u32 1.1754944e-38, %v1200
  %v1202 = vsel %vm1199, %v1201, %v1197
  %v1203 = vmul.f32 1.0, %v1202
  %v1204 = vmul.f32 %v1203, 2.0
  %v1205 = vsub.f32 %v1204, 1.0
  %v1206 = vmul.f32 %v1203, %v1151
  %1208 = vrot.lane.b32.xlu0 %v1205, 64
  %v1209 = vpop.permute.xlu0 %1208
  %v1211 = vmul.f32 %v1203, %v1209
  %1213 = vrot.lane.b32.xlu0 %v1211, 32
  %v1214 = vpop.permute.xlu0 %1213
  %v1216 = vadd.f32 %v1206, %v1214
  %v1217 = vtanh.pop %v1216
  %1219 = vrot.lane.b32.xlu0 %v1217, 64
  %v1220 = vpop.permute.xlu0 %1219
  %v1222 = vmul.f32 %v1203, %v1220
  %1224 = vrot.lane.b32.xlu0 %v1222, 32
  %v1225 = vpop.permute.xlu0 %1224
  %v1227 = vsel %vm185, %v1225, 0.0
  %1228 = vadd.xlane.f32.xlu0 %v1227
  %v1229 = vpop.xlane.xlu0 %1228
  %v1230 = vrcp.pop 32.0
  %v1231 = vmul.f32 32.0, %v1230
  %v1232 = vsub.f32 1.0, %v1231
  %v1233 = vmul.f32 %v1230, %v1232
  %v1234 = vadd.f32 %v1230, %v1233
  %vm1235 = vweird.f32 %v1230
  %v1236 = vsel %vm1235, %v1230, %v1234
  %v1237 = vmul.f32 %v1229, %v1236
  %v1238 = vsub.f32 %v1222, %v1237
  %v1239 = vmul.f32 %v1238, %v1238
  %1241 = vrot.lane.b32.xlu0 %v1239, 32
  %v1242 = vpop.permute.xlu0 %1241
  %v1244 = vsel %vm185, %v1242, 0.0
  %1245 = vadd.xlane.f32.xlu0 %v1244
  %v1246 = vpop.xlane.xlu0 %1245
  %v1247 = vmul.f32 %v1246, %v1236
  %v1248 = vadd.f32 %v1247, 1e-05
  %v1249 = vrsqrt.pop %v1248
  %v1250 = vmul.f32 %v1249, %v1248
  %v1251 = vmul.f32 %v1250, %v1249
  %v1252 = vmul.f32 0.5, %v1251
  %v1253 = vsub.f32 1.5, %v1252
  %v1254 = vmul.f32 %v1249, %v1253
  %vm1255 = vweird.f32 %v1248
  %vm1256 = vweird.f32 %v1249
  %vm1257 = vmor %vm1255, %vm1256
  %v1258 = vsel %vm1257, %v1249, %v1254
  %v1259 = vmul.f32 %v1238, %v1258
  %v1260 = vld [vmem:[%s4] sm:$0x1]
  %v1262 = vperm.slane %v1260, 0
  %1263 = vrot.lane.b32.xlu0 %v1262, 96
  %v1264 = vpop.permute.xlu0 %1263
  %v1266 = vmul.f32 %v1259, %v1264
  %v1267 = vld [vmem:[%s5] sm:$0x1]
  %v1269 = vperm.slane %v1267, 0
  %1270 = vrot.lane.b32.xlu0 %v1269, 96
  %v1271 = vpop.permute.xlu0 %1270
  %v1273 = vadd.f32 %v1266, %v1271
  %v1274 = vmax.f32 %v1273, 0.0
  %v1275 = vld [vmem:[%s6] sm:$0xff]
  %v1276 = vld [vmem:[%s6 + $0x8] sm:$0xff]
  %v1277 = vld [vmem:[%s6 + $0x10] sm:$0xff]
  %v1278 = vld [vmem:[%s6 + $0x18] sm:$0xff]
  %v1279 = vld [vmem:[%s7] sm:$0x1]
  %v1281 = vperm.slane %v1279, 0
  %1284 = vrot.lane.b32.xlu0 %v1274, 32
  %v1285 = vpop.permute.xlu0 %1284
  %v1286 = vsel %vm185, %v1285, 0
  %1288 = vmatpush.msra.mxu0 0.0
  %1289 = vmatpush.msra.mxu0 0.0
  %1290 = vmatpush.msra.mxu0 0.0
  %1291 = vmatpush.msra.mxu0 0.0
  %1292 = vmatpush.msra.mxu0 0.0
  %1293 = vmatpush.msra.mxu0 0.0
  %1294 = vmatpush.msra.mxu0 0.0
  %1295 = vmatpush.msra.mxu0 0.0
  %1296 = vmatpush.msra.mxu0 0.0
  %1297 = vmatpush.msra.mxu0 0.0
  %1298 = vmatpush.msra.mxu0 0.0
  %1299 = vmatpush.msra.mxu0 0.0
  %1300 = vmatpush.msra.mxu0 %v1278
  %1301 = vmatpush.msra.mxu0 %v1277
  %1302 = vmatpush.msra.mxu0 %v1276
  %1303 = vmatpush.msra.mxu0 %v1275
  %1304 = vmatmul.f32.gmra.mxu0 %v1286
  %v1305 = vpop.f32.mrf.mxu0
  %v1306 = vadd.f32 %v1281, %v1305
  %1307 = vdwg.mxu0
  %1308 = vst.msk [vmem:[%s8] sm:$0xff] %vm50, %v1306
  // Predicated region
  $region34: #{lstm_forward.1} parent=0 // pred_check
    _
  $region35: #{lstm_forward.1} parent=0 // pred_check_branch
    %1310 = sbr.rel (0) target = $region37
  $region36: #{lstm_forward.1} parent=0 // pred_region
    _
  $region37: #{lstm_forward.1} parent=0 // pred_fallthru
    _
  // Predicated region
  $region38: #{lstm_forward.1} parent=0 // pred_check
    _
  $region39: #{lstm_forward.1} parent=0 // pred_check_branch
    %1312 = sbr.rel (0) target = $region41
  $region40: #{lstm_forward.1} parent=0 // pred_region
    _
  $region41: #{lstm_forward.1} parent=0 // pred_fallthru
    _

</llo_original>
